<compile_context>
chip_gen: v5e
topology: v5e:2x2
jax: 0.10.0
libtpu: 0.0.40
codegen_flags: <defaults>
</compile_context>

<pallas_src>
import jax
import jax.numpy as jnp
from jax.experimental import pallas as pl
from jax.experimental.pallas import tpu as pltpu

Z_DIM = 20
H1 = 256
H2 = 2048


# ---------------------------------------------------------------------------
# Kernels
# ---------------------------------------------------------------------------
def hidden_kernel(x_ref, w1_ref, b1_ref, w2_ref, b2_ref, h_ref):
    """Layers 1+2: h = ReLU(ReLU(x@w1+b1)@w2+b2), emitted as bf16."""
    x = x_ref[...].astype(jnp.bfloat16)
    h = jnp.dot(x, w1_ref[...], preferred_element_type=jnp.float32)
    h = jnp.maximum(h + b1_ref[...], 0.0)                    # Dropout = id, ReLU
    h = jnp.dot(h.astype(jnp.bfloat16), w2_ref[...],
                preferred_element_type=jnp.float32)
    h = jnp.maximum(h + b2_ref[...], 0.0)                    # Dropout = id, ReLU
    h_ref[...] = h.astype(h_ref.dtype)


def out_tile_kernel(h_ref, w3_ref, b3_ref, o_ref):
    """Layer 3 on one streamed, contiguous (H2, tn) weight tile."""
    o = jnp.dot(h_ref[...], w3_ref[...], preferred_element_type=jnp.float32)
    o_ref[...] = jnp.maximum(o + b3_ref[...], 0.0).astype(o_ref.dtype)


# ---------------------------------------------------------------------------
# Parameter init / one-time packing (pad + pre-tile w3)
# ---------------------------------------------------------------------------
def _choose_tile(input_dim, tn_max):
    """Pick a lane-dense (multiple-of-128) column tile; >=2 tiles if possible."""
    n128 = pl.cdiv(input_dim, 128) * 128
    tn = min(tn_max, n128)
    tiles = pl.cdiv(n128, tn)
    if tiles == 1 and n128 >= 256:
        # Split so both v7x TensorCores get work under ("parallel",) semantics.
        tn = pl.cdiv(n128, 2 * 128) * 128
        tiles = pl.cdiv(n128, tn)
    n_pad = tiles * tn
    return tn, tiles, n_pad


def init_params(key, input_dim):
    """PyTorch-Linear-style init: U(-1/sqrt(fan_in), 1/sqrt(fan_in)).

    Weights stored (in, out) in bf16 (halves the dominant HBM weight stream);
    biases stored (1, out) f32.
    """
    ks = jax.random.split(key, 6)

    def linear(kw, kb, fan_in, fan_out):
        bound = 1.0 / (fan_in ** 0.5)
        w = jax.random.uniform(kw, (fan_in, fan_out), jnp.float32, -bound, bound)
        b = jax.random.uniform(kb, (1, fan_out), jnp.float32, -bound, bound)
        return w.astype(jnp.bfloat16), b

    w1, b1 = linear(ks[0], ks[1], Z_DIM, H1)
    w2, b2 = linear(ks[2], ks[3], H1, H2)
    w3, b3 = linear(ks[4], ks[5], H2, input_dim)
    return {"w1": w1, "b1": b1, "w2": w2, "b2": b2, "w3": w3, "b3": b3}


def pack_decoder_params(raw, input_dim, *, tn_max=2048):
    """One-time: pad w3/b3 to n_pad columns and pre-tile w3 -> (tiles, H2, tn).

    This makes every per-step weight DMA a single contiguous block and removes
    any padding work from the forward path.
    """
    tn, tiles, n_pad = _choose_tile(input_dim, tn_max)
    w3, b3 = raw["w3"], raw["b3"]
    pad = n_pad - input_dim
    if pad:
        w3 = jnp.pad(w3, ((0, 0), (0, pad)))
        b3 = jnp.pad(b3, ((0, 0), (0, pad)))
    w3t = jnp.asarray(w3.reshape(H2, tiles, tn).transpose(1, 0, 2))  # (tiles,H2,tn)
    return {
        "w1": raw["w1"], "b1": raw["b1"],
        "w2": raw["w2"], "b2": raw["b2"],
        "w3t": w3t, "b3p": b3,
        "tn": tn, "tiles": tiles, "n_pad": n_pad, "input_dim": input_dim,
    }


# ---------------------------------------------------------------------------
# Forward
# ---------------------------------------------------------------------------
def decoder_forward(x, p):
    """x: (B, z_dim) f32.  p: packed params from pack_decoder_params."""
    B = x.shape[0]
    tn, tiles, n_pad, input_dim = p["tn"], p["tiles"], p["n_pad"], p["input_dim"]

    # Layers 1+2: tiny single-shot kernel (everything fits in VMEM).
    h = pl.pallas_call(
        hidden_kernel,
        out_shape=jax.ShapeDtypeStruct((B, H2), jnp.bfloat16),
    )(x, p["w1"], p["b1"], p["w2"], p["b2"])

    # Layer 3: stream contiguous w3 column tiles; double-buffered by Pallas.
    out = pl.pallas_call(
        out_tile_kernel,
        out_shape=jax.ShapeDtypeStruct((B, n_pad), jnp.float32),
        grid=(tiles,),
        in_specs=[
            pl.BlockSpec((B, H2), lambda j: (0, 0)),             # h   (resident)
            pl.BlockSpec((None, H2, tn), lambda j: (j, 0, 0)),   # w3  (contiguous tile)
            pl.BlockSpec((1, tn), lambda j: (0, j)),             # b3  (streamed)
        ],
        out_specs=pl.BlockSpec((B, tn), lambda j: (0, j)),
        compiler_params=pltpu.CompilerParams(
            dimension_semantics=("parallel",),    # shards column tiles across TCs on v7x
            vmem_limit_bytes=32 << 20,            # ~16.3 MiB actually needed at tn=2048
        ),
    )(h, p["w3t"], p["b3p"])
    return out[:, :input_dim]


# ---------------------------------------------------------------------------
# Pure-JAX reference (same dtype policy: bf16 dot inputs, f32 accumulation)
# ---------------------------------------------------------------------------
def decoder_reference(x, raw):
    h = jnp.dot(x.astype(jnp.bfloat16), raw["w1"],
                preferred_element_type=jnp.float32)
    h = jnp.maximum(h + raw["b1"], 0.0)
    h = jnp.dot(h.astype(jnp.bfloat16), raw["w2"],
                preferred_element_type=jnp.float32)
    h = jnp.maximum(h + raw["b2"], 0.0)
    o = jnp.dot(h.astype(jnp.bfloat16), raw["w3"],
                preferred_element_type=jnp.float32)
    return jnp.maximum(o + raw["b3"], 0.0)


if __name__ == "__main__":
    key = jax.random.PRNGKey(0)
    k_x, k_p = jax.random.split(key)

    batch = 8
    input_dim = 1000   # non-multiple of 128: exercises padding + the 2-tile grid

    x = jax.random.normal(k_x, (batch, Z_DIM), jnp.float32)
    raw = init_params(k_p, input_dim)
    packed = pack_decoder_params(raw, input_dim)   # one-time pad + pre-tile

    out = decoder_forward(x, packed)
    out = jax.block_until_ready(out)

    ref = decoder_reference(x, raw)
    assert out.shape == (batch, input_dim)
    assert jnp.allclose(out, ref, atol=5e-3, rtol=5e-3)

    print("KERNEL_OK")
</pallas_src>

<mosaic_0001>
module attributes {stable_mosaic.version = 11 : i64} {
  func.func @hidden_kernel(%arg0: memref<8x20xf32, #tpu.memory_space<vmem>>, %arg1: memref<20x256xbf16, #tpu.memory_space<vmem>>, %arg2: memref<1x256xf32, #tpu.memory_space<vmem>>, %arg3: memref<256x2048xbf16, #tpu.memory_space<vmem>>, %arg4: memref<1x2048xf32, #tpu.memory_space<vmem>>, %arg5: memref<8x2048xbf16, #tpu.memory_space<vmem>>) attributes {dimension_semantics = [], scalar_prefetch = 0 : i64, scratch_operands = 0 : i64, tpu.core_type = #tpu.core_type<tc>} {
    %c0 = arith.constant 0 : index
    %c0_0 = arith.constant 0 : index
    %0 = vector.load %arg0[%c0, %c0_0] : memref<8x20xf32, #tpu.memory_space<vmem>>, vector<8x20xf32>
    %1 = arith.truncf %0 : vector<8x20xf32> to vector<8x20xbf16>
    %c0_1 = arith.constant 0 : index
    %c0_2 = arith.constant 0 : index
    %2 = vector.load %arg1[%c0_1, %c0_2] : memref<20x256xbf16, #tpu.memory_space<vmem>>, vector<20x256xbf16>
    %cst = arith.constant dense<0.000000e+00> : vector<8x256xf32>
    %3 = tpu.matmul %1, %2, %cst {dimension_numbers = #tpu.dot_dimension_numbers<[1], [0], [0], [1], [0, 0, 1, 1], [], []>} : vector<8x20xbf16>, vector<20x256xbf16>, vector<8x256xf32> -> vector<8x256xf32>
    %c0_3 = arith.constant 0 : index
    %c0_4 = arith.constant 0 : index
    %4 = vector.load %arg2[%c0_3, %c0_4] : memref<1x256xf32, #tpu.memory_space<vmem>>, vector<1x256xf32>
    %5 = vector.broadcast %4 : vector<1x256xf32> to vector<8x256xf32>
    %6 = arith.addf %3, %5 : vector<8x256xf32>
    %cst_5 = arith.constant 0.000000e+00 : f32
    %7 = vector.broadcast %cst_5 : f32 to vector<8x256xf32>
    %8 = arith.maximumf %6, %7 : vector<8x256xf32>
    %9 = arith.truncf %8 : vector<8x256xf32> to vector<8x256xbf16>
    %c0_6 = arith.constant 0 : index
    %c0_7 = arith.constant 0 : index
    %10 = vector.load %arg3[%c0_6, %c0_7] : memref<256x2048xbf16, #tpu.memory_space<vmem>>, vector<256x2048xbf16>
    %cst_8 = arith.constant dense<0.000000e+00> : vector<8x2048xf32>
    %11 = tpu.matmul %9, %10, %cst_8 {dimension_numbers = #tpu.dot_dimension_numbers<[1], [0], [0], [1], [0, 0, 1, 1], [], []>} : vector<8x256xbf16>, vector<256x2048xbf16>, vector<8x2048xf32> -> vector<8x2048xf32>
    %c0_9 = arith.constant 0 : index
    %c0_10 = arith.constant 0 : index
    %12 = vector.load %arg4[%c0_9, %c0_10] : memref<1x2048xf32, #tpu.memory_space<vmem>>, vector<1x2048xf32>
    %13 = vector.broadcast %12 : vector<1x2048xf32> to vector<8x2048xf32>
    %14 = arith.addf %11, %13 : vector<8x2048xf32>
    %cst_11 = arith.constant 0.000000e+00 : f32
    %15 = vector.broadcast %cst_11 : f32 to vector<8x2048xf32>
    %16 = arith.maximumf %14, %15 : vector<8x2048xf32>
    %17 = arith.truncf %16 : vector<8x2048xf32> to vector<8x2048xbf16>
    %c0_12 = arith.constant 0 : index
    %c0_13 = arith.constant 0 : index
    %18 = vector.load %arg5[%c0_12, %c0_13] : memref<8x2048xbf16, #tpu.memory_space<vmem>>, vector<8x2048xbf16>
    tpu.vector_store %arg5[%c0_12, %c0_13], %17 {strides = array<i32>} : memref<8x2048xbf16, #tpu.memory_space<vmem>>, vector<8x2048xbf16>,
    return
  }
}

</mosaic_0001>

<llo_original>
// kernel: tpu_custom_call.1
$region0: #{tpu_custom_call.1}
  #allocation0 [shape = 'u32[]', space=smem, size = 0x4, offset = 0x4, fixed_abs, tag = 'smem constant byte address 0x4 - core index']
  #allocation1 [shape = 'u32[72,128]{1,0:T(1,128)}', space=vmem, size = 0x9000, scoped, tag = 'internal scratch']
  %s0 = inlined_call_operand.hbm [shape: f32[8,20], index: 0, kind: input, shape index: {}]
  %s1 = inlined_call_operand.hbm [shape: bf16[20,256], index: 1, kind: input, shape index: {}]
  %s2 = inlined_call_operand.hbm [shape: f32[1,256], index: 2, kind: input, shape index: {}]
  %s3 = inlined_call_operand.hbm [shape: bf16[256,2048], index: 3, kind: input, shape index: {}]
  %s4 = inlined_call_operand.hbm [shape: f32[1,2048], index: 4, kind: input, shape index: {}]
  %s5 = inlined_call_operand.hbm [shape: bf16[8,2048], index: 5, kind: output, shape index: {}]
  %s6 = sld [smem:[#allocation0]]
  $region50: #{tpu_custom_call.1} parent=0
    _
  %s8 = ssub.s32 1, %s6
  %s9 = scalar_select 0, %s8, %s6
  $region1: #{tpu_custom_call.1} parent=0
    #allocation2 [shape = 'u8[4096]{0}', space=vmem, size = 0x1000, scoped, tag = 'input window, operand 0, single buffered']
    #allocation3 [shape = 's32[1]{0}', space=sflag, size = 0x4, scoped, tag = 'scoped memory for tpu_custom_call.1']
    #allocation4 [shape = 's32[1]{0}', space=sflag, size = 0x4, scoped, tag = 'scoped memory for tpu_custom_call.1']
    #allocation5 [shape = 'u8[12288]{0}', space=vmem, size = 0x3000, scoped, tag = 'input window, operand 1, single buffered']
    #allocation6 [shape = 's32[1]{0}', space=sflag, size = 0x4, scoped, tag = 'scoped memory for tpu_custom_call.1']
    #allocation7 [shape = 'u8[1024]{0}', space=vmem, size = 0x400, scoped, tag = 'input window, operand 2, single buffered']
    #allocation8 [shape = 'u8[1048576]{0}', space=vmem, size = 0x100000, scoped, tag = 'input window, operand 3, single buffered']
    #allocation9 [shape = 's32[1]{0}', space=sflag, size = 0x4, scoped, tag = 'scoped memory for tpu_custom_call.1']
    #allocation10 [shape = 'u8[8192]{0}', space=vmem, size = 0x2000, scoped, tag = 'input window, operand 4, single buffered']
    #allocation11 [shape = 'u8[32768]{0}', space=vmem, size = 0x8000, scoped, tag = 'output window, operand 0, single buffered']
    %10 = vsyncpa [#allocation3], 0
    %11 = vsyncpa [#allocation6], 0
    %12 = vsyncpa [#allocation9], 0
    %13 = vsyncpa [#allocation4], 0
    // Predicated region
    $region2: #{tpu_custom_call.1} parent=1 // pred_check
      _
    $region3: #{tpu_custom_call.1} parent=1 // pred_check_branch
      %15 = sbr.rel (0) target = $region5
    $region4: #{tpu_custom_call.1} parent=1 // pred_region
      %17 = vsyncadd [#allocation3], 0
      %s19 = sshll.u32 %s0, 4
      %s20 = int_to_ptr.hbm [resolvable:$true] %s19
      %s21 = sshll.u32 [#allocation2], 4
      %s22 = int_to_ptr.vmem [resolvable:$true] %s21
      %24 = dma.hbm_to_vmem [thread:$0]  %s20, 128, %s22, [#allocation3]
    $region5: #{tpu_custom_call.1} parent=1 // pred_fallthru
      _
    // Predicated region
    $region6: #{tpu_custom_call.1} parent=1 // pred_check
      _
    $region7: #{tpu_custom_call.1} parent=1 // pred_check_branch
      %26 = sbr.rel (0) target = $region9
    $region8: #{tpu_custom_call.1} parent=1 // pred_region
      %28 = vsyncadd [#allocation6], 0
      %s29 = sshll.u32 %s1, 4
      %s30 = int_to_ptr.hbm [resolvable:$true] %s29
      %s31 = sshll.u32 [#allocation5], 4
      %s32 = int_to_ptr.vmem [resolvable:$true] %s31
      %37 = dma.hbm_to_vmem [thread:$0]  %s30, 384, %s32, [#allocation6], 128, 128, 8
    $region9: #{tpu_custom_call.1} parent=1 // pred_fallthru
      _
    // Predicated region
    $region10: #{tpu_custom_call.1} parent=1 // pred_check
      _
    $region11: #{tpu_custom_call.1} parent=1 // pred_check_branch
      %39 = sbr.rel (0) target = $region13
    $region12: #{tpu_custom_call.1} parent=1 // pred_region
      %41 = vsyncadd [#allocation6], 0
      %s43 = sshll.u32 %s2, 4
      %s44 = int_to_ptr.hbm [resolvable:$true] %s43
      %s45 = sshll.u32 [#allocation7], 4
      %s46 = int_to_ptr.vmem [resolvable:$true] %s45
      %48 = dma.hbm_to_vmem [thread:$0]  %s44, 32, %s46, [#allocation6]
    $region13: #{tpu_custom_call.1} parent=1 // pred_fallthru
      _
    // Predicated region
    $region14: #{tpu_custom_call.1} parent=1 // pred_check
      _
    $region15: #{tpu_custom_call.1} parent=1 // pred_check_branch
      %50 = sbr.rel (0) target = $region17
    $region16: #{tpu_custom_call.1} parent=1 // pred_region
      %52 = vsyncadd [#allocation9], 0
      %s53 = sshll.u32 %s3, 4
      %s54 = int_to_ptr.hbm [resolvable:$true] %s53
      %s55 = sshll.u32 [#allocation8], 4
      %s56 = int_to_ptr.vmem [resolvable:$true] %s55
      %61 = dma.hbm_to_vmem [thread:$0]  %s54, 32768, %s56, [#allocation9], 1024, 1024, 64
    $region17: #{tpu_custom_call.1} parent=1 // pred_fallthru
      _
    // Predicated region
    $region18: #{tpu_custom_call.1} parent=1 // pred_check
      _
    $region19: #{tpu_custom_call.1} parent=1 // pred_check_branch
      %63 = sbr.rel (0) target = $region21
    $region20: #{tpu_custom_call.1} parent=1 // pred_region
      %65 = vsyncadd [#allocation9], 0
      %s67 = sshll.u32 %s4, 4
      %s68 = int_to_ptr.hbm [resolvable:$true] %s67
      %s69 = sshll.u32 [#allocation10], 4
      %s70 = int_to_ptr.vmem [resolvable:$true] %s69
      %72 = dma.hbm_to_vmem [thread:$0]  %s68, 256, %s70, [#allocation9]
    $region21: #{tpu_custom_call.1} parent=1 // pred_fallthru
      _
    // Predicated region
    $region22: #{tpu_custom_call.1} parent=1 // pred_check
      _
    $region23: #{tpu_custom_call.1} parent=1 // pred_check_branch
      %74 = sbr.rel (0) target = $region25
    $region24: #{tpu_custom_call.1} parent=1 // pred_region
      %76 = dma.done [#allocation3], 128
    $region25: #{tpu_custom_call.1} parent=1 // pred_fallthru
      _
    // Predicated region
    $region26: #{tpu_custom_call.1} parent=1 // pred_check
      _
    $region27: #{tpu_custom_call.1} parent=1 // pred_check_branch
      %78 = sbr.rel (0) target = $region29
    $region28: #{tpu_custom_call.1} parent=1 // pred_region
      %80 = dma.done [#allocation6], 384
    $region29: #{tpu_custom_call.1} parent=1 // pred_fallthru
      _
    // Predicated region
    $region30: #{tpu_custom_call.1} parent=1 // pred_check
      _
    $region31: #{tpu_custom_call.1} parent=1 // pred_check_branch
      %82 = sbr.rel (0) target = $region33
    $region32: #{tpu_custom_call.1} parent=1 // pred_region
      %84 = dma.done [#allocation6], 32
    $region33: #{tpu_custom_call.1} parent=1 // pred_fallthru
      _
    // Predicated region
    $region34: #{tpu_custom_call.1} parent=1 // pred_check
      _
    $region35: #{tpu_custom_call.1} parent=1 // pred_check_branch
      %86 = sbr.rel (0) target = $region37
    $region36: #{tpu_custom_call.1} parent=1 // pred_region
      %88 = dma.done [#allocation9], 32768
    $region37: #{tpu_custom_call.1} parent=1 // pred_fallthru
      _
    // Predicated region
    $region38: #{tpu_custom_call.1} parent=1 // pred_check
      _
    $region39: #{tpu_custom_call.1} parent=1 // pred_check_branch
      %90 = sbr.rel (0) target = $region41
    $region40: #{tpu_custom_call.1} parent=1 // pred_region
      %92 = dma.done [#allocation9], 256
    $region41: #{tpu_custom_call.1} parent=1 // pred_fallthru
      _
    %v94 = vld [vmem:[#allocation2] sm:$0xff]
    %v95 = vpack.c.bf16 %v94, %v94
    %v96 = vld [vmem:[#allocation5] sm:$0xff]
    %v97 = vld [vmem:[#allocation5 + $0x8] sm:$0xff]
    %v98 = vld [vmem:[#allocation5 + $0x10] sm:$0x33]
    %v99 = vld [vmem:[#allocation7] sm:$0x3]
    %v101 = vperm.slane %v99, 0
    %v102 = vperm.slane %v99, 1
    %v108 = vunpack.c.l.b16 %v96
    %v109 = vunpack.c.h.b16 %v96
    %v110 = vunpack.c.l.b16 %v97
    %v111 = vunpack.c.h.b16 %v97
    %v112 = vunpack.c.l.b16 %v98
    %v113 = vunpack.c.h.b16 %v98
    %v114 = vpack.c.b16 %v110, %v108
    %v115 = vpack.c.b16 %v111, %v109
    %v116 = vpack.c.b16 %v112, %v112
    %v117 = vpack.c.b16 %v113, %v113
    %vm120 = vcmask 162816
    %v122 = vsel %vm120, %v95, 0
    %vm124 = vcmask 1041408
    %v126 = vsel %vm124, %v116, 0
    %v129 = vsel %vm124, %v117, 0
    %131 = vmatpush.bf16.msra.mxu0 0
    %132 = vmatpush.bf16.msra.mxu0 0
    %133 = vmatpush.bf16.msra.mxu0 0
    %134 = vmatpush.bf16.msra.mxu0 0
    %135 = vmatpush.bf16.msra.mxu0 0
    %136 = vmatpush.bf16.msra.mxu0 0
    %137 = vmatpush.bf16.msra.mxu0 %v126
    %138 = vmatpush.bf16.msra.mxu0 %v114
    %139 = vmatmul.bf16.gmra.mxu0 %v122
    %v140 = vpop.f32.mrf.mxu0
    %v141 = vadd.f32 %v101, %v140
    %v142 = vpop.f32.mrf.mxu0
    %143 = vdwg.mxu0
    %144 = vmatpush.bf16.msra.mxu0 0
    %145 = vmatpush.bf16.msra.mxu0 0
    %146 = vmatpush.bf16.msra.mxu0 0
    %147 = vmatpush.bf16.msra.mxu0 0
    %148 = vmatpush.bf16.msra.mxu0 0
    %149 = vmatpush.bf16.msra.mxu0 0
    %150 = vmatpush.bf16.msra.mxu0 %v129
    %151 = vmatpush.bf16.msra.mxu0 %v115
    %152 = vmatmul.bf16.gmra.mxu0 %v122
    %v153 = vpop.f32.mrf.mxu0
    %v154 = vadd.f32 %v102, %v153
    %v155 = vpop.f32.mrf.mxu0
    %156 = vdwg.mxu0
    %v157 = vmax.f32 %v141, 0.0
    %v158 = vmax.f32 %v154, 0.0
    %v159 = vpack.c.bf16 %v157, %v157
    %v160 = vpack.c.bf16 %v158, %v158
    %v161 = vld [vmem:[#allocation8] sm:$0xff]
    %v162 = vld [vmem:[#allocation8 + $0x8] sm:$0xff]
    %v163 = vld [vmem:[#allocation8 + $0x10] sm:$0xff]
    %v164 = vld [vmem:[#allocation8 + $0x18] sm:$0xff]
    %v165 = vld [vmem:[#allocation8 + $0x20] sm:$0xff]
    %v166 = vld [vmem:[#allocation8 + $0x28] sm:$0xff]
    %v167 = vld [vmem:[#allocation8 + $0x30] sm:$0xff]
    %v168 = vld [vmem:[#allocation8 + $0x38] sm:$0xff]
    %v169 = vld [vmem:[#allocation8 + $0x40] sm:$0xff]
    %v170 = vld [vmem:[#allocation8 + $0x48] sm:$0xff]
    %v171 = vld [vmem:[#allocation8 + $0x50] sm:$0xff]
    %v172 = vld [vmem:[#allocation8 + $0x58] sm:$0xff]
    %v173 = vld [vmem:[#allocation8 + $0x60] sm:$0xff]
    %v174 = vld [vmem:[#allocation8 + $0x68] sm:$0xff]
    %v175 = vld [vmem:[#allocation8 + $0x70] sm:$0xff]
    %v176 = vld [vmem:[#allocation8 + $0x78] sm:$0xff]
    %v177 = vld [vmem:[#allocation8 + $0x80] sm:$0xff]
    %v178 = vld [vmem:[#allocation8 + $0x88] sm:$0xff]
    %v179 = vld [vmem:[#allocation8 + $0x90] sm:$0xff]
    %v180 = vld [vmem:[#allocation8 + $0x98] sm:$0xff]
    %v181 = vld [vmem:[#allocation8 + $0xa0] sm:$0xff]
    %v182 = vld [vmem:[#allocation8 + $0xa8] sm:$0xff]
    %v183 = vld [vmem:[#allocation8 + $0xb0] sm:$0xff]
    %v184 = vld [vmem:[#allocation8 + $0xb8] sm:$0xff]
    %v185 = vld [vmem:[#allocation8 + $0xc0] sm:$0xff]
    %v186 = vld [vmem:[#allocation8 + $0xc8] sm:$0xff]
    %v187 = vld [vmem:[#allocation8 + $0xd0] sm:$0xff]
    %v188 = vld [vmem:[#allocation8 + $0xd8] sm:$0xff]
    %v189 = vld [vmem:[#allocation8 + $0xe0] sm:$0xff]
    %v190 = vld [vmem:[#allocation8 + $0xe8] sm:$0xff]
    %v191 = vld [vmem:[#allocation8 + $0xf0] sm:$0xff]
    %v192 = vld [vmem:[#allocation8 + $0xf8] sm:$0xff]
    %v193 = vld [vmem:[#allocation8 + $0x100] sm:$0xff]
    %v194 = vld [vmem:[#allocation8 + $0x108] sm:$0xff]
    %v195 = vld [vmem:[#allocation8 + $0x110] sm:$0xff]
    %v196 = vld [vmem:[#allocation8 + $0x118] sm:$0xff]
    %v197 = vld [vmem:[#allocation8 + $0x120] sm:$0xff]
    %v198 = vld [vmem:[#allocation8 + $0x128] sm:$0xff]
    %v199 = vld [vmem:[#allocation8 + $0x130] sm:$0xff]
    %v200 = vld [vmem:[#allocation8 + $0x138] sm:$0xff]
    %v201 = vld [vmem:[#allocation8 + $0x140] sm:$0xff]
    %v202 = vld [vmem:[#allocation8 + $0x148] sm:$0xff]
    %v203 = vld [vmem:[#allocation8 + $0x150] sm:$0xff]
    %v204 = vld [vmem:[#allocation8 + $0x158] sm:$0xff]
    %v205 = vld [vmem:[#allocation8 + $0x160] sm:$0xff]
    %v206 = vld [vmem:[#allocation8 + $0x168] sm:$0xff]
    %v207 = vld [vmem:[#allocation8 + $0x170] sm:$0xff]
    %v208 = vld [vmem:[#allocation8 + $0x178] sm:$0xff]
    %v209 = vld [vmem:[#allocation8 + $0x180] sm:$0xff]
    %v210 = vld [vmem:[#allocation8 + $0x188] sm:$0xff]
    %v211 = vld [vmem:[#allocation8 + $0x190] sm:$0xff]
    %v212 = vld [vmem:[#allocation8 + $0x198] sm:$0xff]
    %v213 = vld [vmem:[#allocation8 + $0x1a0] sm:$0xff]
    %v214 = vld [vmem:[#allocation8 + $0x1a8] sm:$0xff]
    %v215 = vld [vmem:[#allocation8 + $0x1b0] sm:$0xff]
    %v216 = vld [vmem:[#allocation8 + $0x1b8] sm:$0xff]
    %v217 = vld [vmem:[#allocation8 + $0x1c0] sm:$0xff]
    %v218 = vld [vmem:[#allocation8 + $0x1c8] sm:$0xff]
    %v219 = vld [vmem:[#allocation8 + $0x1d0] sm:$0xff]
    %v220 = vld [vmem:[#allocation8 + $0x1d8] sm:$0xff]
    %v221 = vld [vmem:[#allocation8 + $0x1e0] sm:$0xff]
    %v222 = vld [vmem:[#allocation8 + $0x1e8] sm:$0xff]
    %v223 = vld [vmem:[#allocation8 + $0x1f0] sm:$0xff]
    %v224 = vld [vmem:[#allocation8 + $0x1f8] sm:$0xff]
    %v225 = vld [vmem:[#allocation8 + $0x200] sm:$0xff]
    %v226 = vld [vmem:[#allocation8 + $0x208] sm:$0xff]
    %v227 = vld [vmem:[#allocation8 + $0x210] sm:$0xff]
    %v228 = vld [vmem:[#allocation8 + $0x218] sm:$0xff]
    %v229 = vld [vmem:[#allocation8 + $0x220] sm:$0xff]
    %v230 = vld [vmem:[#allocation8 + $0x228] sm:$0xff]
    %v231 = vld [vmem:[#allocation8 + $0x230] sm:$0xff]
    %v232 = vld [vmem:[#allocation8 + $0x238] sm:$0xff]
    %v233 = vld [vmem:[#allocation8 + $0x240] sm:$0xff]
    %v234 = vld [vmem:[#allocation8 + $0x248] sm:$0xff]
    %v235 = vld [vmem:[#allocation8 + $0x250] sm:$0xff]
    %v236 = vld [vmem:[#allocation8 + $0x258] sm:$0xff]
    %v237 = vld [vmem:[#allocation8 + $0x260] sm:$0xff]
    %v238 = vld [vmem:[#allocation8 + $0x268] sm:$0xff]
    %v239 = vld [vmem:[#allocation8 + $0x270] sm:$0xff]
    %v240 = vld [vmem:[#allocation8 + $0x278] sm:$0xff]
    %v241 = vld [vmem:[#allocation8 + $0x280] sm:$0xff]
    %v242 = vld [vmem:[#allocation8 + $0x288] sm:$0xff]
    %v243 = vld [vmem:[#allocation8 + $0x290] sm:$0xff]
    %v244 = vld [vmem:[#allocation8 + $0x298] sm:$0xff]
    %v245 = vld [vmem:[#allocation8 + $0x2a0] sm:$0xff]
    %v246 = vld [vmem:[#allocation8 + $0x2a8] sm:$0xff]
    %v247 = vld [vmem:[#allocation8 + $0x2b0] sm:$0xff]
    %v248 = vld [vmem:[#allocation8 + $0x2b8] sm:$0xff]
    %v249 = vld [vmem:[#allocation8 + $0x2c0] sm:$0xff]
    %v250 = vld [vmem:[#allocation8 + $0x2c8] sm:$0xff]
    %v251 = vld [vmem:[#allocation8 + $0x2d0] sm:$0xff]
    %v252 = vld [vmem:[#allocation8 + $0x2d8] sm:$0xff]
    %v253 = vld [vmem:[#allocation8 + $0x2e0] sm:$0xff]
    %v254 = vld [vmem:[#allocation8 + $0x2e8] sm:$0xff]
    %v255 = vld [vmem:[#allocation8 + $0x2f0] sm:$0xff]
    %v256 = vld [vmem:[#allocation8 + $0x2f8] sm:$0xff]
    %v257 = vld [vmem:[#allocation8 + $0x300] sm:$0xff]
    %v258 = vld [vmem:[#allocation8 + $0x308] sm:$0xff]
    %v259 = vld [vmem:[#allocation8 + $0x310] sm:$0xff]
    %v260 = vld [vmem:[#allocation8 + $0x318] sm:$0xff]
    %v261 = vld [vmem:[#allocation8 + $0x320] sm:$0xff]
    %v262 = vld [vmem:[#allocation8 + $0x328] sm:$0xff]
    %v263 = vld [vmem:[#allocation8 + $0x330] sm:$0xff]
    %v264 = vld [vmem:[#allocation8 + $0x338] sm:$0xff]
    %v265 = vld [vmem:[#allocation8 + $0x340] sm:$0xff]
    %v266 = vld [vmem:[#allocation8 + $0x348] sm:$0xff]
    %v267 = vld [vmem:[#allocation8 + $0x350] sm:$0xff]
    %v268 = vld [vmem:[#allocation8 + $0x358] sm:$0xff]
    %v269 = vld [vmem:[#allocation8 + $0x360] sm:$0xff]
    %v270 = vld [vmem:[#allocation8 + $0x368] sm:$0xff]
    %v271 = vld [vmem:[#allocation8 + $0x370] sm:$0xff]
    %v272 = vld [vmem:[#allocation8 + $0x378] sm:$0xff]
    %v273 = vld [vmem:[#allocation8 + $0x380] sm:$0xff]
    %v274 = vld [vmem:[#allocation8 + $0x388] sm:$0xff]
    %v275 = vld [vmem:[#allocation8 + $0x390] sm:$0xff]
    %v276 = vld [vmem:[#allocation8 + $0x398] sm:$0xff]
    %v277 = vld [vmem:[#allocation8 + $0x3a0] sm:$0xff]
    %v278 = vld [vmem:[#allocation8 + $0x3a8] sm:$0xff]
    %v279 = vld [vmem:[#allocation8 + $0x3b0] sm:$0xff]
    %v280 = vld [vmem:[#allocation8 + $0x3b8] sm:$0xff]
    %v281 = vld [vmem:[#allocation8 + $0x3c0] sm:$0xff]
    %v282 = vld [vmem:[#allocation8 + $0x3c8] sm:$0xff]
    %v283 = vld [vmem:[#allocation8 + $0x3d0] sm:$0xff]
    %v284 = vld [vmem:[#allocation8 + $0x3d8] sm:$0xff]
    %v285 = vld [vmem:[#allocation8 + $0x3e0] sm:$0xff]
    %v286 = vld [vmem:[#allocation8 + $0x3e8] sm:$0xff]
    %v287 = vld [vmem:[#allocation8 + $0x3f0] sm:$0xff]
    %v288 = vld [vmem:[#allocation8 + $0x3f8] sm:$0xff]
    %v289 = vld [vmem:[#allocation8 + $0x400] sm:$0xff]
    %v290 = vld [vmem:[#allocation8 + $0x408] sm:$0xff]
    %v291 = vld [vmem:[#allocation8 + $0x410] sm:$0xff]
    %v292 = vld [vmem:[#allocation8 + $0x418] sm:$0xff]
    %v293 = vld [vmem:[#allocation8 + $0x420] sm:$0xff]
    %v294 = vld [vmem:[#allocation8 + $0x428] sm:$0xff]
    %v295 = vld [vmem:[#allocation8 + $0x430] sm:$0xff]
    %v296 = vld [vmem:[#allocation8 + $0x438] sm:$0xff]
    %v297 = vld [vmem:[#allocation8 + $0x440] sm:$0xff]
    %v298 = vld [vmem:[#allocation8 + $0x448] sm:$0xff]
    %v299 = vld [vmem:[#allocation8 + $0x450] sm:$0xff]
    %v300 = vld [vmem:[#allocation8 + $0x458] sm:$0xff]
    %v301 = vld [vmem:[#allocation8 + $0x460] sm:$0xff]
    %v302 = vld [vmem:[#allocation8 + $0x468] sm:$0xff]
    %v303 = vld [vmem:[#allocation8 + $0x470] sm:$0xff]
    %v304 = vld [vmem:[#allocation8 + $0x478] sm:$0xff]
    %v305 = vld [vmem:[#allocation8 + $0x480] sm:$0xff]
    %v306 = vld [vmem:[#allocation8 + $0x488] sm:$0xff]
    %v307 = vld [vmem:[#allocation8 + $0x490] sm:$0xff]
    %v308 = vld [vmem:[#allocation8 + $0x498] sm:$0xff]
    %v309 = vld [vmem:[#allocation8 + $0x4a0] sm:$0xff]
    %v310 = vld [vmem:[#allocation8 + $0x4a8] sm:$0xff]
    %v311 = vld [vmem:[#allocation8 + $0x4b0] sm:$0xff]
    %v312 = vld [vmem:[#allocation8 + $0x4b8] sm:$0xff]
    %v313 = vld [vmem:[#allocation8 + $0x4c0] sm:$0xff]
    %v314 = vld [vmem:[#allocation8 + $0x4c8] sm:$0xff]
    %v315 = vld [vmem:[#allocation8 + $0x4d0] sm:$0xff]
    %v316 = vld [vmem:[#allocation8 + $0x4d8] sm:$0xff]
    %v317 = vld [vmem:[#allocation8 + $0x4e0] sm:$0xff]
    %v318 = vld [vmem:[#allocation8 + $0x4e8] sm:$0xff]
    %v319 = vld [vmem:[#allocation8 + $0x4f0] sm:$0xff]
    %v320 = vld [vmem:[#allocation8 + $0x4f8] sm:$0xff]
    %v321 = vld [vmem:[#allocation8 + $0x500] sm:$0xff]
    %v322 = vld [vmem:[#allocation8 + $0x508] sm:$0xff]
    %v323 = vld [vmem:[#allocation8 + $0x510] sm:$0xff]
    %v324 = vld [vmem:[#allocation8 + $0x518] sm:$0xff]
    %v325 = vld [vmem:[#allocation8 + $0x520] sm:$0xff]
    %v326 = vld [vmem:[#allocation8 + $0x528] sm:$0xff]
    %v327 = vld [vmem:[#allocation8 + $0x530] sm:$0xff]
    %v328 = vld [vmem:[#allocation8 + $0x538] sm:$0xff]
    %v329 = vld [vmem:[#allocation8 + $0x540] sm:$0xff]
    %v330 = vld [vmem:[#allocation8 + $0x548] sm:$0xff]
    %v331 = vld [vmem:[#allocation8 + $0x550] sm:$0xff]
    %v332 = vld [vmem:[#allocation8 + $0x558] sm:$0xff]
    %v333 = vld [vmem:[#allocation8 + $0x560] sm:$0xff]
    %v334 = vld [vmem:[#allocation8 + $0x568] sm:$0xff]
    %v335 = vld [vmem:[#allocation8 + $0x570] sm:$0xff]
    %v336 = vld [vmem:[#allocation8 + $0x578] sm:$0xff]
    %v337 = vld [vmem:[#allocation8 + $0x580] sm:$0xff]
    %v338 = vld [vmem:[#allocation8 + $0x588] sm:$0xff]
    %v339 = vld [vmem:[#allocation8 + $0x590] sm:$0xff]
    %v340 = vld [vmem:[#allocation8 + $0x598] sm:$0xff]
    %v341 = vld [vmem:[#allocation8 + $0x5a0] sm:$0xff]
    %v342 = vld [vmem:[#allocation8 + $0x5a8] sm:$0xff]
    %v343 = vld [vmem:[#allocation8 + $0x5b0] sm:$0xff]
    %v344 = vld [vmem:[#allocation8 + $0x5b8] sm:$0xff]
    %v345 = vld [vmem:[#allocation8 + $0x5c0] sm:$0xff]
    %v346 = vld [vmem:[#allocation8 + $0x5c8] sm:$0xff]
    %v347 = vld [vmem:[#allocation8 + $0x5d0] sm:$0xff]
    %v348 = vld [vmem:[#allocation8 + $0x5d8] sm:$0xff]
    %v349 = vld [vmem:[#allocation8 + $0x5e0] sm:$0xff]
    %v350 = vld [vmem:[#allocation8 + $0x5e8] sm:$0xff]
    %v351 = vld [vmem:[#allocation8 + $0x5f0] sm:$0xff]
    %v352 = vld [vmem:[#allocation8 + $0x5f8] sm:$0xff]
    %v353 = vld [vmem:[#allocation8 + $0x600] sm:$0xff]
    %v354 = vld [vmem:[#allocation8 + $0x608] sm:$0xff]
    %v355 = vld [vmem:[#allocation8 + $0x610] sm:$0xff]
    %v356 = vld [vmem:[#allocation8 + $0x618] sm:$0xff]
    %v357 = vld [vmem:[#allocation8 + $0x620] sm:$0xff]
    %v358 = vld [vmem:[#allocation8 + $0x628] sm:$0xff]
    %v359 = vld [vmem:[#allocation8 + $0x630] sm:$0xff]
    %v360 = vld [vmem:[#allocation8 + $0x638] sm:$0xff]
    %v361 = vld [vmem:[#allocation8 + $0x640] sm:$0xff]
    %v362 = vld [vmem:[#allocation8 + $0x648] sm:$0xff]
    %v363 = vld [vmem:[#allocation8 + $0x650] sm:$0xff]
    %v364 = vld [vmem:[#allocation8 + $0x658] sm:$0xff]
    %v365 = vld [vmem:[#allocation8 + $0x660] sm:$0xff]
    %v366 = vld [vmem:[#allocation8 + $0x668] sm:$0xff]
    %v367 = vld [vmem:[#allocation8 + $0x670] sm:$0xff]
    %v368 = vld [vmem:[#allocation8 + $0x678] sm:$0xff]
    %v369 = vld [vmem:[#allocation8 + $0x680] sm:$0xff]
    %v370 = vld [vmem:[#allocation8 + $0x688] sm:$0xff]
    %v371 = vld [vmem:[#allocation8 + $0x690] sm:$0xff]
    %v372 = vld [vmem:[#allocation8 + $0x698] sm:$0xff]
    %v373 = vld [vmem:[#allocation8 + $0x6a0] sm:$0xff]
    %v374 = vld [vmem:[#allocation8 + $0x6a8] sm:$0xff]
    %v375 = vld [vmem:[#allocation8 + $0x6b0] sm:$0xff]
    %v376 = vld [vmem:[#allocation8 + $0x6b8] sm:$0xff]
    %v377 = vld [vmem:[#allocation8 + $0x6c0] sm:$0xff]
    %v378 = vld [vmem:[#allocation8 + $0x6c8] sm:$0xff]
    %v379 = vld [vmem:[#allocation8 + $0x6d0] sm:$0xff]
    %v380 = vld [vmem:[#allocation8 + $0x6d8] sm:$0xff]
    %v381 = vld [vmem:[#allocation8 + $0x6e0] sm:$0xff]
    %v382 = vld [vmem:[#allocation8 + $0x6e8] sm:$0xff]
    %v383 = vld [vmem:[#allocation8 + $0x6f0] sm:$0xff]
    %v384 = vld [vmem:[#allocation8 + $0x6f8] sm:$0xff]
    %v385 = vld [vmem:[#allocation8 + $0x700] sm:$0xff]
    %v386 = vld [vmem:[#allocation8 + $0x708] sm:$0xff]
    %v387 = vld [vmem:[#allocation8 + $0x710] sm:$0xff]
    %v388 = vld [vmem:[#allocation8 + $0x718] sm:$0xff]
    %v389 = vld [vmem:[#allocation8 + $0x720] sm:$0xff]
    %v390 = vld [vmem:[#allocation8 + $0x728] sm:$0xff]
    %v391 = vld [vmem:[#allocation8 + $0x730] sm:$0xff]
    %v392 = vld [vmem:[#allocation8 + $0x738] sm:$0xff]
    %v393 = vld [vmem:[#allocation8 + $0x740] sm:$0xff]
    %v394 = vld [vmem:[#allocation8 + $0x748] sm:$0xff]
    %v395 = vld [vmem:[#allocation8 + $0x750] sm:$0xff]
    %v396 = vld [vmem:[#allocation8 + $0x758] sm:$0xff]
    %v397 = vld [vmem:[#allocation8 + $0x760] sm:$0xff]
    %v398 = vld [vmem:[#allocation8 + $0x768] sm:$0xff]
    %v399 = vld [vmem:[#allocation8 + $0x770] sm:$0xff]
    %v400 = vld [vmem:[#allocation8 + $0x778] sm:$0xff]
    %v401 = vld [vmem:[#allocation8 + $0x780] sm:$0xff]
    %v402 = vld [vmem:[#allocation8 + $0x788] sm:$0xff]
    %v403 = vld [vmem:[#allocation8 + $0x790] sm:$0xff]
    %v404 = vld [vmem:[#allocation8 + $0x798] sm:$0xff]
    %v405 = vld [vmem:[#allocation8 + $0x7a0] sm:$0xff]
    %v406 = vld [vmem:[#allocation8 + $0x7a8] sm:$0xff]
    %v407 = vld [vmem:[#allocation8 + $0x7b0] sm:$0xff]
    %v408 = vld [vmem:[#allocation8 + $0x7b8] sm:$0xff]
    %v409 = vld [vmem:[#allocation8 + $0x7c0] sm:$0xff]
    %v410 = vld [vmem:[#allocation8 + $0x7c8] sm:$0xff]
    %v411 = vld [vmem:[#allocation8 + $0x7d0] sm:$0xff]
    %v412 = vld [vmem:[#allocation8 + $0x7d8] sm:$0xff]
    %v413 = vld [vmem:[#allocation8 + $0x7e0] sm:$0xff]
    %v414 = vld [vmem:[#allocation8 + $0x7e8] sm:$0xff]
    %v415 = vld [vmem:[#allocation8 + $0x7f0] sm:$0xff]
    %v416 = vld [vmem:[#allocation8 + $0x7f8] sm:$0xff]
    %v417 = vld [vmem:[#allocation10] sm:$0xff]
    %v418 = vld [vmem:[#allocation10 + $0x8] sm:$0xff]
    %v421 = vperm.slane %v417, 0
    %v422 = vperm.slane %v417, 1
    %v423 = vperm.slane %v417, 2
    %v424 = vperm.slane %v417, 3
    %v425 = vperm.slane %v417, 4
    %v426 = vperm.slane %v417, 5
    %v427 = vperm.slane %v417, 6
    %v428 = vperm.slane %v417, 7
    %v429 = vperm.slane %v418, 0
    %v430 = vperm.slane %v418, 1
    %v431 = vperm.slane %v418, 2
    %v432 = vperm.slane %v418, 3
    %v433 = vperm.slane %v418, 4
    %v434 = vperm.slane %v418, 5
    %v435 = vperm.slane %v418, 6
    %v436 = vperm.slane %v418, 7
    %v709 = vunpack.c.l.b16 %v161
    %v710 = vunpack.c.h.b16 %v161
    %v711 = vunpack.c.l.b16 %v162
    %v712 = vunpack.c.h.b16 %v162
    %v713 = vunpack.c.l.b16 %v163
    %v714 = vunpack.c.h.b16 %v163
    %v715 = vunpack.c.l.b16 %v164
    %v716 = vunpack.c.h.b16 %v164
    %v717 = vunpack.c.l.b16 %v165
    %v718 = vunpack.c.h.b16 %v165
    %v719 = vunpack.c.l.b16 %v166
    %v720 = vunpack.c.h.b16 %v166
    %v721 = vunpack.c.l.b16 %v167
    %v722 = vunpack.c.h.b16 %v167
    %v723 = vunpack.c.l.b16 %v168
    %v724 = vunpack.c.h.b16 %v168
    %v725 = vunpack.c.l.b16 %v169
    %v726 = vunpack.c.h.b16 %v169
    %v727 = vunpack.c.l.b16 %v170
    %v728 = vunpack.c.h.b16 %v170
    %v729 = vunpack.c.l.b16 %v171
    %v730 = vunpack.c.h.b16 %v171
    %v731 = vunpack.c.l.b16 %v172
    %v732 = vunpack.c.h.b16 %v172
    %v733 = vunpack.c.l.b16 %v173
    %v734 = vunpack.c.h.b16 %v173
    %v735 = vunpack.c.l.b16 %v174
    %v736 = vunpack.c.h.b16 %v174
    %v737 = vunpack.c.l.b16 %v175
    %v738 = vunpack.c.h.b16 %v175
    %v739 = vunpack.c.l.b16 %v176
    %v740 = vunpack.c.h.b16 %v176
    %v741 = vunpack.c.l.b16 %v177
    %v742 = vunpack.c.h.b16 %v177
    %v743 = vunpack.c.l.b16 %v178
    %v744 = vunpack.c.h.b16 %v178
    %v745 = vunpack.c.l.b16 %v179
    %v746 = vunpack.c.h.b16 %v179
    %v747 = vunpack.c.l.b16 %v180
    %v748 = vunpack.c.h.b16 %v180
    %v749 = vunpack.c.l.b16 %v181
    %v750 = vunpack.c.h.b16 %v181
    %v751 = vunpack.c.l.b16 %v182
    %v752 = vunpack.c.h.b16 %v182
    %v753 = vunpack.c.l.b16 %v183
    %v754 = vunpack.c.h.b16 %v183
    %v755 = vunpack.c.l.b16 %v184
    %v756 = vunpack.c.h.b16 %v184
    %v757 = vunpack.c.l.b16 %v185
    %v758 = vunpack.c.h.b16 %v185
    %v759 = vunpack.c.l.b16 %v186
    %v760 = vunpack.c.h.b16 %v186
    %v761 = vunpack.c.l.b16 %v187
    %v762 = vunpack.c.h.b16 %v187
    %v763 = vunpack.c.l.b16 %v188
    %v764 = vunpack.c.h.b16 %v188
    %v765 = vunpack.c.l.b16 %v189
    %v766 = vunpack.c.h.b16 %v189
    %v767 = vunpack.c.l.b16 %v190
    %v768 = vunpack.c.h.b16 %v190
    %v769 = vunpack.c.l.b16 %v191
    %v770 = vunpack.c.h.b16 %v191
    %v771 = vunpack.c.l.b16 %v192
    %v772 = vunpack.c.h.b16 %v192
    %v773 = vunpack.c.l.b16 %v193
    %v774 = vunpack.c.h.b16 %v193
    %v775 = vunpack.c.l.b16 %v194
    %v776 = vunpack.c.h.b16 %v194
    %v777 = vunpack.c.l.b16 %v195
    %v778 = vunpack.c.h.b16 %v195
    %v779 = vunpack.c.l.b16 %v196
    %v780 = vunpack.c.h.b16 %v196
    %v781 = vunpack.c.l.b16 %v197
    %v782 = vunpack.c.h.b16 %v197
    %v783 = vunpack.c.l.b16 %v198
    %v784 = vunpack.c.h.b16 %v198
    %v785 = vunpack.c.l.b16 %v199
    %v786 = vunpack.c.h.b16 %v199
    %v787 = vunpack.c.l.b16 %v200
    %v788 = vunpack.c.h.b16 %v200
    %v789 = vunpack.c.l.b16 %v201
    %v790 = vunpack.c.h.b16 %v201
    %v791 = vunpack.c.l.b16 %v202
    %v792 = vunpack.c.h.b16 %v202
    %v793 = vunpack.c.l.b16 %v203
    %v794 = vunpack.c.h.b16 %v203
    %v795 = vunpack.c.l.b16 %v204
    %v796 = vunpack.c.h.b16 %v204
    %v797 = vunpack.c.l.b16 %v205
    %v798 = vunpack.c.h.b16 %v205
    %v799 = vunpack.c.l.b16 %v206
    %v800 = vunpack.c.h.b16 %v206
    %v801 = vunpack.c.l.b16 %v207
    %v802 = vunpack.c.h.b16 %v207
    %v803 = vunpack.c.l.b16 %v208
    %v804 = vunpack.c.h.b16 %v208
    %v805 = vunpack.c.l.b16 %v209
    %v806 = vunpack.c.h.b16 %v209
    %v807 = vunpack.c.l.b16 %v210
    %v808 = vunpack.c.h.b16 %v210
    %v809 = vunpack.c.l.b16 %v211
    %v810 = vunpack.c.h.b16 %v211
    %v811 = vunpack.c.l.b16 %v212
    %v812 = vunpack.c.h.b16 %v212
    %v813 = vunpack.c.l.b16 %v213
    %v814 = vunpack.c.h.b16 %v213
    %v815 = vunpack.c.l.b16 %v214
    %v816 = vunpack.c.h.b16 %v214
    %v817 = vunpack.c.l.b16 %v215
    %v818 = vunpack.c.h.b16 %v215
    %v819 = vunpack.c.l.b16 %v216
    %v820 = vunpack.c.h.b16 %v216
    %v821 = vunpack.c.l.b16 %v217
    %v822 = vunpack.c.h.b16 %v217
    %v823 = vunpack.c.l.b16 %v218
    %v824 = vunpack.c.h.b16 %v218
    %v825 = vunpack.c.l.b16 %v219
    %v826 = vunpack.c.h.b16 %v219
    %v827 = vunpack.c.l.b16 %v220
    %v828 = vunpack.c.h.b16 %v220
    %v829 = vunpack.c.l.b16 %v221
    %v830 = vunpack.c.h.b16 %v221
    %v831 = vunpack.c.l.b16 %v222
    %v832 = vunpack.c.h.b16 %v222
    %v833 = vunpack.c.l.b16 %v223
    %v834 = vunpack.c.h.b16 %v223
    %v835 = vunpack.c.l.b16 %v224
    %v836 = vunpack.c.h.b16 %v224
    %v837 = vunpack.c.l.b16 %v225
    %v838 = vunpack.c.h.b16 %v225
    %v839 = vunpack.c.l.b16 %v226
    %v840 = vunpack.c.h.b16 %v226
    %v841 = vunpack.c.l.b16 %v227
    %v842 = vunpack.c.h.b16 %v227
    %v843 = vunpack.c.l.b16 %v228
    %v844 = vunpack.c.h.b16 %v228
    %v845 = vunpack.c.l.b16 %v229
    %v846 = vunpack.c.h.b16 %v229
    %v847 = vunpack.c.l.b16 %v230
    %v848 = vunpack.c.h.b16 %v230
    %v849 = vunpack.c.l.b16 %v231
    %v850 = vunpack.c.h.b16 %v231
    %v851 = vunpack.c.l.b16 %v232
    %v852 = vunpack.c.h.b16 %v232
    %v853 = vunpack.c.l.b16 %v233
    %v854 = vunpack.c.h.b16 %v233
    %v855 = vunpack.c.l.b16 %v234
    %v856 = vunpack.c.h.b16 %v234
    %v857 = vunpack.c.l.b16 %v235
    %v858 = vunpack.c.h.b16 %v235
    %v859 = vunpack.c.l.b16 %v236
    %v860 = vunpack.c.h.b16 %v236
    %v861 = vunpack.c.l.b16 %v237
    %v862 = vunpack.c.h.b16 %v237
    %v863 = vunpack.c.l.b16 %v238
    %v864 = vunpack.c.h.b16 %v238
    %v865 = vunpack.c.l.b16 %v239
    %v866 = vunpack.c.h.b16 %v239
    %v867 = vunpack.c.l.b16 %v240
    %v868 = vunpack.c.h.b16 %v240
    %v869 = vunpack.c.l.b16 %v241
    %v870 = vunpack.c.h.b16 %v241
    %v871 = vunpack.c.l.b16 %v242
    %v872 = vunpack.c.h.b16 %v242
    %v873 = vunpack.c.l.b16 %v243
    %v874 = vunpack.c.h.b16 %v243
    %v875 = vunpack.c.l.b16 %v244
    %v876 = vunpack.c.h.b16 %v244
    %v877 = vunpack.c.l.b16 %v245
    %v878 = vunpack.c.h.b16 %v245
    %v879 = vunpack.c.l.b16 %v246
    %v880 = vunpack.c.h.b16 %v246
    %v881 = vunpack.c.l.b16 %v247
    %v882 = vunpack.c.h.b16 %v247
    %v883 = vunpack.c.l.b16 %v248
    %v884 = vunpack.c.h.b16 %v248
    %v885 = vunpack.c.l.b16 %v249
    %v886 = vunpack.c.h.b16 %v249
    %v887 = vunpack.c.l.b16 %v250
    %v888 = vunpack.c.h.b16 %v250
    %v889 = vunpack.c.l.b16 %v251
    %v890 = vunpack.c.h.b16 %v251
    %v891 = vunpack.c.l.b16 %v252
    %v892 = vunpack.c.h.b16 %v252
    %v893 = vunpack.c.l.b16 %v253
    %v894 = vunpack.c.h.b16 %v253
    %v895 = vunpack.c.l.b16 %v254
    %v896 = vunpack.c.h.b16 %v254
    %v897 = vunpack.c.l.b16 %v255
    %v898 = vunpack.c.h.b16 %v255
    %v899 = vunpack.c.l.b16 %v256
    %v900 = vunpack.c.h.b16 %v256
    %v901 = vunpack.c.l.b16 %v257
    %v902 = vunpack.c.h.b16 %v257
    %v903 = vunpack.c.l.b16 %v258
    %v904 = vunpack.c.h.b16 %v258
    %v905 = vunpack.c.l.b16 %v259
    %v906 = vunpack.c.h.b16 %v259
    %v907 = vunpack.c.l.b16 %v260
    %v908 = vunpack.c.h.b16 %v260
    %v909 = vunpack.c.l.b16 %v261
    %v910 = vunpack.c.h.b16 %v261
    %v911 = vunpack.c.l.b16 %v262
    %v912 = vunpack.c.h.b16 %v262
    %v913 = vunpack.c.l.b16 %v263
    %v914 = vunpack.c.h.b16 %v263
    %v915 = vunpack.c.l.b16 %v264
    %v916 = vunpack.c.h.b16 %v264
    %v917 = vunpack.c.l.b16 %v265
    %v918 = vunpack.c.h.b16 %v265
    %v919 = vunpack.c.l.b16 %v266
    %v920 = vunpack.c.h.b16 %v266
    %v921 = vunpack.c.l.b16 %v267
    %v922 = vunpack.c.h.b16 %v267
    %v923 = vunpack.c.l.b16 %v268
    %v924 = vunpack.c.h.b16 %v268
    %v925 = vunpack.c.l.b16 %v269
    %v926 = vunpack.c.h.b16 %v269
    %v927 = vunpack.c.l.b16 %v270
    %v928 = vunpack.c.h.b16 %v270
    %v929 = vunpack.c.l.b16 %v271
    %v930 = vunpack.c.h.b16 %v271
    %v931 = vunpack.c.l.b16 %v272
    %v932 = vunpack.c.h.b16 %v272
    %v933 = vunpack.c.l.b16 %v273
    %v934 = vunpack.c.h.b16 %v273
    %v935 = vunpack.c.l.b16 %v274
    %v936 = vunpack.c.h.b16 %v274
    %v937 = vunpack.c.l.b16 %v275
    %v938 = vunpack.c.h.b16 %v275
    %v939 = vunpack.c.l.b16 %v276
    %v940 = vunpack.c.h.b16 %v276
    %v941 = vunpack.c.l.b16 %v277
    %v942 = vunpack.c.h.b16 %v277
    %v943 = vunpack.c.l.b16 %v278
    %v944 = vunpack.c.h.b16 %v278
    %v945 = vunpack.c.l.b16 %v279
    %v946 = vunpack.c.h.b16 %v279
    %v947 = vunpack.c.l.b16 %v280
    %v948 = vunpack.c.h.b16 %v280
    %v949 = vunpack.c.l.b16 %v281
    %v950 = vunpack.c.h.b16 %v281
    %v951 = vunpack.c.l.b16 %v282
    %v952 = vunpack.c.h.b16 %v282
    %v953 = vunpack.c.l.b16 %v283
    %v954 = vunpack.c.h.b16 %v283
    %v955 = vunpack.c.l.b16 %v284
    %v956 = vunpack.c.h.b16 %v284
    %v957 = vunpack.c.l.b16 %v285
    %v958 = vunpack.c.h.b16 %v285
    %v959 = vunpack.c.l.b16 %v286
    %v960 = vunpack.c.h.b16 %v286
    %v961 = vunpack.c.l.b16 %v287
    %v962 = vunpack.c.h.b16 %v287
    %v963 = vunpack.c.l.b16 %v288
    %v964 = vunpack.c.h.b16 %v288
    %v965 = vunpack.c.l.b16 %v289
    %v966 = vunpack.c.h.b16 %v289
    %v967 = vunpack.c.l.b16 %v290
    %v968 = vunpack.c.h.b16 %v290
    %v969 = vunpack.c.l.b16 %v291
    %v970 = vunpack.c.h.b16 %v291
    %v971 = vunpack.c.l.b16 %v292
    %v972 = vunpack.c.h.b16 %v292
    %v973 = vunpack.c.l.b16 %v293
    %v974 = vunpack.c.h.b16 %v293
    %v975 = vunpack.c.l.b16 %v294
    %v976 = vunpack.c.h.b16 %v294
    %v977 = vunpack.c.l.b16 %v295
    %v978 = vunpack.c.h.b16 %v295
    %v979 = vunpack.c.l.b16 %v296
    %v980 = vunpack.c.h.b16 %v296
    %v981 = vunpack.c.l.b16 %v297
    %v982 = vunpack.c.h.b16 %v297
    %v983 = vunpack.c.l.b16 %v298
    %v984 = vunpack.c.h.b16 %v298
    %v985 = vunpack.c.l.b16 %v299
    %v986 = vunpack.c.h.b16 %v299
    %v987 = vunpack.c.l.b16 %v300
    %v988 = vunpack.c.h.b16 %v300
    %v989 = vunpack.c.l.b16 %v301
    %v990 = vunpack.c.h.b16 %v301
    %v991 = vunpack.c.l.b16 %v302
    %v992 = vunpack.c.h.b16 %v302
    %v993 = vunpack.c.l.b16 %v303
    %v994 = vunpack.c.h.b16 %v303
    %v995 = vunpack.c.l.b16 %v304
    %v996 = vunpack.c.h.b16 %v304
    %v997 = vunpack.c.l.b16 %v305
    %v998 = vunpack.c.h.b16 %v305
    %v999 = vunpack.c.l.b16 %v306
    %v1000 = vunpack.c.h.b16 %v306
    %v1001 = vunpack.c.l.b16 %v307
    %v1002 = vunpack.c.h.b16 %v307
    %v1003 = vunpack.c.l.b16 %v308
    %v1004 = vunpack.c.h.b16 %v308
    %v1005 = vunpack.c.l.b16 %v309
    %v1006 = vunpack.c.h.b16 %v309
    %v1007 = vunpack.c.l.b16 %v310
    %v1008 = vunpack.c.h.b16 %v310
    %v1009 = vunpack.c.l.b16 %v311
    %v1010 = vunpack.c.h.b16 %v311
    %v1011 = vunpack.c.l.b16 %v312
    %v1012 = vunpack.c.h.b16 %v312
    %v1013 = vunpack.c.l.b16 %v313
    %v1014 = vunpack.c.h.b16 %v313
    %v1015 = vunpack.c.l.b16 %v314
    %v1016 = vunpack.c.h.b16 %v314
    %v1017 = vunpack.c.l.b16 %v315
    %v1018 = vunpack.c.h.b16 %v315
    %v1019 = vunpack.c.l.b16 %v316
    %v1020 = vunpack.c.h.b16 %v316
    %v1021 = vunpack.c.l.b16 %v317
    %v1022 = vunpack.c.h.b16 %v317
    %v1023 = vunpack.c.l.b16 %v318
    %v1024 = vunpack.c.h.b16 %v318
    %v1025 = vunpack.c.l.b16 %v319
    %v1026 = vunpack.c.h.b16 %v319
    %v1027 = vunpack.c.l.b16 %v320
    %v1028 = vunpack.c.h.b16 %v320
    %v1029 = vunpack.c.l.b16 %v321
    %v1030 = vunpack.c.h.b16 %v321
    %v1031 = vunpack.c.l.b16 %v322
    %v1032 = vunpack.c.h.b16 %v322
    %v1033 = vunpack.c.l.b16 %v323
    %v1034 = vunpack.c.h.b16 %v323
    %v1035 = vunpack.c.l.b16 %v324
    %v1036 = vunpack.c.h.b16 %v324
    %v1037 = vunpack.c.l.b16 %v325
    %v1038 = vunpack.c.h.b16 %v325
    %v1039 = vunpack.c.l.b16 %v326
    %v1040 = vunpack.c.h.b16 %v326
    %v1041 = vunpack.c.l.b16 %v327
    %v1042 = vunpack.c.h.b16 %v327
    %v1043 = vunpack.c.l.b16 %v328
    %v1044 = vunpack.c.h.b16 %v328
    %v1045 = vunpack.c.l.b16 %v329
    %v1046 = vunpack.c.h.b16 %v329
    %v1047 = vunpack.c.l.b16 %v330
    %v1048 = vunpack.c.h.b16 %v330
    %v1049 = vunpack.c.l.b16 %v331
    %v1050 = vunpack.c.h.b16 %v331
    %v1051 = vunpack.c.l.b16 %v332
    %v1052 = vunpack.c.h.b16 %v332
    %v1053 = vunpack.c.l.b16 %v333
    %v1054 = vunpack.c.h.b16 %v333
    %v1055 = vunpack.c.l.b16 %v334
    %v1056 = vunpack.c.h.b16 %v334
    %v1057 = vunpack.c.l.b16 %v335
    %v1058 = vunpack.c.h.b16 %v335
    %v1059 = vunpack.c.l.b16 %v336
    %v1060 = vunpack.c.h.b16 %v336
    %v1061 = vunpack.c.l.b16 %v337
    %v1062 = vunpack.c.h.b16 %v337
    %v1063 = vunpack.c.l.b16 %v338
    %v1064 = vunpack.c.h.b16 %v338
    %v1065 = vunpack.c.l.b16 %v339
    %v1066 = vunpack.c.h.b16 %v339
    %v1067 = vunpack.c.l.b16 %v340
    %v1068 = vunpack.c.h.b16 %v340
    %v1069 = vunpack.c.l.b16 %v341
    %v1070 = vunpack.c.h.b16 %v341
    %v1071 = vunpack.c.l.b16 %v342
    %v1072 = vunpack.c.h.b16 %v342
    %v1073 = vunpack.c.l.b16 %v343
    %v1074 = vunpack.c.h.b16 %v343
    %v1075 = vunpack.c.l.b16 %v344
    %v1076 = vunpack.c.h.b16 %v344
    %v1077 = vunpack.c.l.b16 %v345
    %v1078 = vunpack.c.h.b16 %v345
    %v1079 = vunpack.c.l.b16 %v346
    %v1080 = vunpack.c.h.b16 %v346
    %v1081 = vunpack.c.l.b16 %v347
    %v1082 = vunpack.c.h.b16 %v347
    %v1083 = vunpack.c.l.b16 %v348
    %v1084 = vunpack.c.h.b16 %v348
    %v1085 = vunpack.c.l.b16 %v349
    %v1086 = vunpack.c.h.b16 %v349
    %v1087 = vunpack.c.l.b16 %v350
    %v1088 = vunpack.c.h.b16 %v350
    %v1089 = vunpack.c.l.b16 %v351
    %v1090 = vunpack.c.h.b16 %v351
    %v1091 = vunpack.c.l.b16 %v352
    %v1092 = vunpack.c.h.b16 %v352
    %v1093 = vunpack.c.l.b16 %v353
    %v1094 = vunpack.c.h.b16 %v353
    %v1095 = vunpack.c.l.b16 %v354
    %v1096 = vunpack.c.h.b16 %v354
    %v1097 = vunpack.c.l.b16 %v355
    %v1098 = vunpack.c.h.b16 %v355
    %v1099 = vunpack.c.l.b16 %v356
    %v1100 = vunpack.c.h.b16 %v356
    %v1101 = vunpack.c.l.b16 %v357
    %v1102 = vunpack.c.h.b16 %v357
    %v1103 = vunpack.c.l.b16 %v358
    %v1104 = vunpack.c.h.b16 %v358
    %v1105 = vunpack.c.l.b16 %v359
    %v1106 = vunpack.c.h.b16 %v359
    %v1107 = vunpack.c.l.b16 %v360
    %v1108 = vunpack.c.h.b16 %v360
    %v1109 = vunpack.c.l.b16 %v361
    %v1110 = vunpack.c.h.b16 %v361
    %v1111 = vunpack.c.l.b16 %v362
    %v1112 = vunpack.c.h.b16 %v362
    %v1113 = vunpack.c.l.b16 %v363
    %v1114 = vunpack.c.h.b16 %v363
    %v1115 = vunpack.c.l.b16 %v364
    %v1116 = vunpack.c.h.b16 %v364
    %v1117 = vunpack.c.l.b16 %v365
    %v1118 = vunpack.c.h.b16 %v365
    %v1119 = vunpack.c.l.b16 %v366
    %v1120 = vunpack.c.h.b16 %v366
    %v1121 = vunpack.c.l.b16 %v367
    %v1122 = vunpack.c.h.b16 %v367
    %v1123 = vunpack.c.l.b16 %v368
    %v1124 = vunpack.c.h.b16 %v368
    %v1125 = vunpack.c.l.b16 %v369
    %v1126 = vunpack.c.h.b16 %v369
    %v1127 = vunpack.c.l.b16 %v370
    %v1128 = vunpack.c.h.b16 %v370
    %v1129 = vunpack.c.l.b16 %v371
    %v1130 = vunpack.c.h.b16 %v371
    %v1131 = vunpack.c.l.b16 %v372
    %v1132 = vunpack.c.h.b16 %v372
    %v1133 = vunpack.c.l.b16 %v373
    %v1134 = vunpack.c.h.b16 %v373
    %v1135 = vunpack.c.l.b16 %v374
    %v1136 = vunpack.c.h.b16 %v374
    %v1137 = vunpack.c.l.b16 %v375
    %v1138 = vunpack.c.h.b16 %v375
    %v1139 = vunpack.c.l.b16 %v376
    %v1140 = vunpack.c.h.b16 %v376
    %v1141 = vunpack.c.l.b16 %v377
    %v1142 = vunpack.c.h.b16 %v377
    %v1143 = vunpack.c.l.b16 %v378
    %v1144 = vunpack.c.h.b16 %v378
    %v1145 = vunpack.c.l.b16 %v379
    %v1146 = vunpack.c.h.b16 %v379
    %v1147 = vunpack.c.l.b16 %v380
    %v1148 = vunpack.c.h.b16 %v380
    %v1149 = vunpack.c.l.b16 %v381
    %v1150 = vunpack.c.h.b16 %v381
    %v1151 = vunpack.c.l.b16 %v382
    %v1152 = vunpack.c.h.b16 %v382
    %v1153 = vunpack.c.l.b16 %v383
    %v1154 = vunpack.c.h.b16 %v383
    %v1155 = vunpack.c.l.b16 %v384
    %v1156 = vunpack.c.h.b16 %v384
    %v1157 = vunpack.c.l.b16 %v385
    %v1158 = vunpack.c.h.b16 %v385
    %v1159 = vunpack.c.l.b16 %v386
    %v1160 = vunpack.c.h.b16 %v386
    %v1161 = vunpack.c.l.b16 %v387
    %v1162 = vunpack.c.h.b16 %v387
    %v1163 = vunpack.c.l.b16 %v388
    %v1164 = vunpack.c.h.b16 %v388
    %v1165 = vunpack.c.l.b16 %v389
    %v1166 = vunpack.c.h.b16 %v389
    %v1167 = vunpack.c.l.b16 %v390
    %v1168 = vunpack.c.h.b16 %v390
    %v1169 = vunpack.c.l.b16 %v391
    %v1170 = vunpack.c.h.b16 %v391
    %v1171 = vunpack.c.l.b16 %v392
    %v1172 = vunpack.c.h.b16 %v392
    %v1173 = vunpack.c.l.b16 %v393
    %v1174 = vunpack.c.h.b16 %v393
    %v1175 = vunpack.c.l.b16 %v394
    %v1176 = vunpack.c.h.b16 %v394
    %v1177 = vunpack.c.l.b16 %v395
    %v1178 = vunpack.c.h.b16 %v395
    %v1179 = vunpack.c.l.b16 %v396
    %v1180 = vunpack.c.h.b16 %v396
    %v1181 = vunpack.c.l.b16 %v397
    %v1182 = vunpack.c.h.b16 %v397
    %v1183 = vunpack.c.l.b16 %v398
    %v1184 = vunpack.c.h.b16 %v398
    %v1185 = vunpack.c.l.b16 %v399
    %v1186 = vunpack.c.h.b16 %v399
    %v1187 = vunpack.c.l.b16 %v400
    %v1188 = vunpack.c.h.b16 %v400
    %v1189 = vunpack.c.l.b16 %v401
    %v1190 = vunpack.c.h.b16 %v401
    %v1191 = vunpack.c.l.b16 %v402
    %v1192 = vunpack.c.h.b16 %v402
    %v1193 = vunpack.c.l.b16 %v403
    %v1194 = vunpack.c.h.b16 %v403
    %v1195 = vunpack.c.l.b16 %v404
    %v1196 = vunpack.c.h.b16 %v404
    %v1197 = vunpack.c.l.b16 %v405
    %v1198 = vunpack.c.h.b16 %v405
    %v1199 = vunpack.c.l.b16 %v406
    %v1200 = vunpack.c.h.b16 %v406
    %v1201 = vunpack.c.l.b16 %v407
    %v1202 = vunpack.c.h.b16 %v407
    %v1203 = vunpack.c.l.b16 %v408
    %v1204 = vunpack.c.h.b16 %v408
    %v1205 = vunpack.c.l.b16 %v409
    %v1206 = vunpack.c.h.b16 %v409
    %v1207 = vunpack.c.l.b16 %v410
    %v1208 = vunpack.c.h.b16 %v410
    %v1209 = vunpack.c.l.b16 %v411
    %v1210 = vunpack.c.h.b16 %v411
    %v1211 = vunpack.c.l.b16 %v412
    %v1212 = vunpack.c.h.b16 %v412
    %v1213 = vunpack.c.l.b16 %v413
    %v1214 = vunpack.c.h.b16 %v413
    %v1215 = vunpack.c.l.b16 %v414
    %v1216 = vunpack.c.h.b16 %v414
    %v1217 = vunpack.c.l.b16 %v415
    %v1218 = vunpack.c.h.b16 %v415
    %v1219 = vunpack.c.l.b16 %v416
    %v1220 = vunpack.c.h.b16 %v416
    %v1221 = vpack.c.b16 %v725, %v709
    %v1222 = vpack.c.b16 %v726, %v710
    %v1223 = vpack.c.b16 %v727, %v711
    %v1224 = vpack.c.b16 %v728, %v712
    %v1225 = vpack.c.b16 %v729, %v713
    %v1226 = vpack.c.b16 %v730, %v714
    %v1227 = vpack.c.b16 %v731, %v715
    %v1228 = vpack.c.b16 %v732, %v716
    %v1229 = vpack.c.b16 %v733, %v717
    %v1230 = vpack.c.b16 %v734, %v718
    %v1231 = vpack.c.b16 %v735, %v719
    %v1232 = vpack.c.b16 %v736, %v720
    %v1233 = vpack.c.b16 %v737, %v721
    %v1234 = vpack.c.b16 %v738, %v722
    %v1235 = vpack.c.b16 %v739, %v723
    %v1236 = vpack.c.b16 %v740, %v724
    %v1237 = vpack.c.b16 %v757, %v741
    %v1238 = vpack.c.b16 %v758, %v742
    %v1239 = vpack.c.b16 %v759, %v743
    %v1240 = vpack.c.b16 %v760, %v744
    %v1241 = vpack.c.b16 %v761, %v745
    %v1242 = vpack.c.b16 %v762, %v746
    %v1243 = vpack.c.b16 %v763, %v747
    %v1244 = vpack.c.b16 %v764, %v748
    %v1245 = vpack.c.b16 %v765, %v749
    %v1246 = vpack.c.b16 %v766, %v750
    %v1247 = vpack.c.b16 %v767, %v751
    %v1248 = vpack.c.b16 %v768, %v752
    %v1249 = vpack.c.b16 %v769, %v753
    %v1250 = vpack.c.b16 %v770, %v754
    %v1251 = vpack.c.b16 %v771, %v755
    %v1252 = vpack.c.b16 %v772, %v756
    %v1253 = vpack.c.b16 %v789, %v773
    %v1254 = vpack.c.b16 %v790, %v774
    %v1255 = vpack.c.b16 %v791, %v775
    %v1256 = vpack.c.b16 %v792, %v776
    %v1257 = vpack.c.b16 %v793, %v777
    %v1258 = vpack.c.b16 %v794, %v778
    %v1259 = vpack.c.b16 %v795, %v779
    %v1260 = vpack.c.b16 %v796, %v780
    %v1261 = vpack.c.b16 %v797, %v781
    %v1262 = vpack.c.b16 %v798, %v782
    %v1263 = vpack.c.b16 %v799, %v783
    %v1264 = vpack.c.b16 %v800, %v784
    %v1265 = vpack.c.b16 %v801, %v785
    %v1266 = vpack.c.b16 %v802, %v786
    %v1267 = vpack.c.b16 %v803, %v787
    %v1268 = vpack.c.b16 %v804, %v788
    %v1269 = vpack.c.b16 %v821, %v805
    %v1270 = vpack.c.b16 %v822, %v806
    %v1271 = vpack.c.b16 %v823, %v807
    %v1272 = vpack.c.b16 %v824, %v808
    %v1273 = vpack.c.b16 %v825, %v809
    %v1274 = vpack.c.b16 %v826, %v810
    %v1275 = vpack.c.b16 %v827, %v811
    %v1276 = vpack.c.b16 %v828, %v812
    %v1277 = vpack.c.b16 %v829, %v813
    %v1278 = vpack.c.b16 %v830, %v814
    %v1279 = vpack.c.b16 %v831, %v815
    %v1280 = vpack.c.b16 %v832, %v816
    %v1281 = vpack.c.b16 %v833, %v817
    %v1282 = vpack.c.b16 %v834, %v818
    %v1283 = vpack.c.b16 %v835, %v819
    %v1284 = vpack.c.b16 %v836, %v820
    %v1285 = vpack.c.b16 %v853, %v837
    %v1286 = vpack.c.b16 %v854, %v838
    %v1287 = vpack.c.b16 %v855, %v839
    %v1288 = vpack.c.b16 %v856, %v840
    %v1289 = vpack.c.b16 %v857, %v841
    %v1290 = vpack.c.b16 %v858, %v842
    %v1291 = vpack.c.b16 %v859, %v843
    %v1292 = vpack.c.b16 %v860, %v844
    %v1293 = vpack.c.b16 %v861, %v845
    %v1294 = vpack.c.b16 %v862, %v846
    %v1295 = vpack.c.b16 %v863, %v847
    %v1296 = vpack.c.b16 %v864, %v848
    %v1297 = vpack.c.b16 %v865, %v849
    %v1298 = vpack.c.b16 %v866, %v850
    %v1299 = vpack.c.b16 %v867, %v851
    %v1300 = vpack.c.b16 %v868, %v852
    %v1301 = vpack.c.b16 %v885, %v869
    %v1302 = vpack.c.b16 %v886, %v870
    %v1303 = vpack.c.b16 %v887, %v871
    %v1304 = vpack.c.b16 %v888, %v872
    %v1305 = vpack.c.b16 %v889, %v873
    %v1306 = vpack.c.b16 %v890, %v874
    %v1307 = vpack.c.b16 %v891, %v875
    %v1308 = vpack.c.b16 %v892, %v876
    %v1309 = vpack.c.b16 %v893, %v877
    %v1310 = vpack.c.b16 %v894, %v878
    %v1311 = vpack.c.b16 %v895, %v879
    %v1312 = vpack.c.b16 %v896, %v880
    %v1313 = vpack.c.b16 %v897, %v881
    %v1314 = vpack.c.b16 %v898, %v882
    %v1315 = vpack.c.b16 %v899, %v883
    %v1316 = vpack.c.b16 %v900, %v884
    %v1317 = vpack.c.b16 %v917, %v901
    %v1318 = vpack.c.b16 %v918, %v902
    %v1319 = vpack.c.b16 %v919, %v903
    %v1320 = vpack.c.b16 %v920, %v904
    %v1321 = vpack.c.b16 %v921, %v905
    %v1322 = vpack.c.b16 %v922, %v906
    %v1323 = vpack.c.b16 %v923, %v907
    %v1324 = vpack.c.b16 %v924, %v908
    %v1325 = vpack.c.b16 %v925, %v909
    %v1326 = vpack.c.b16 %v926, %v910
    %v1327 = vpack.c.b16 %v927, %v911
    %v1328 = vpack.c.b16 %v928, %v912
    %v1329 = vpack.c.b16 %v929, %v913
    %v1330 = vpack.c.b16 %v930, %v914
    %v1331 = vpack.c.b16 %v931, %v915
    %v1332 = vpack.c.b16 %v932, %v916
    %v1333 = vpack.c.b16 %v949, %v933
    %v1334 = vpack.c.b16 %v950, %v934
    %v1335 = vpack.c.b16 %v951, %v935
    %v1336 = vpack.c.b16 %v952, %v936
    %v1337 = vpack.c.b16 %v953, %v937
    %v1338 = vpack.c.b16 %v954, %v938
    %v1339 = vpack.c.b16 %v955, %v939
    %v1340 = vpack.c.b16 %v956, %v940
    %v1341 = vpack.c.b16 %v957, %v941
    %v1342 = vpack.c.b16 %v958, %v942
    %v1343 = vpack.c.b16 %v959, %v943
    %v1344 = vpack.c.b16 %v960, %v944
    %v1345 = vpack.c.b16 %v961, %v945
    %v1346 = vpack.c.b16 %v962, %v946
    %v1347 = vpack.c.b16 %v963, %v947
    %v1348 = vpack.c.b16 %v964, %v948
    %v1349 = vpack.c.b16 %v981, %v965
    %v1350 = vpack.c.b16 %v982, %v966
    %v1351 = vpack.c.b16 %v983, %v967
    %v1352 = vpack.c.b16 %v984, %v968
    %v1353 = vpack.c.b16 %v985, %v969
    %v1354 = vpack.c.b16 %v986, %v970
    %v1355 = vpack.c.b16 %v987, %v971
    %v1356 = vpack.c.b16 %v988, %v972
    %v1357 = vpack.c.b16 %v989, %v973
    %v1358 = vpack.c.b16 %v990, %v974
    %v1359 = vpack.c.b16 %v991, %v975
    %v1360 = vpack.c.b16 %v992, %v976
    %v1361 = vpack.c.b16 %v993, %v977
    %v1362 = vpack.c.b16 %v994, %v978
    %v1363 = vpack.c.b16 %v995, %v979
    %v1364 = vpack.c.b16 %v996, %v980
    %v1365 = vpack.c.b16 %v1013, %v997
    %v1366 = vpack.c.b16 %v1014, %v998
    %v1367 = vpack.c.b16 %v1015, %v999
    %v1368 = vpack.c.b16 %v1016, %v1000
    %v1369 = vpack.c.b16 %v1017, %v1001
    %v1370 = vpack.c.b16 %v1018, %v1002
    %v1371 = vpack.c.b16 %v1019, %v1003
    %v1372 = vpack.c.b16 %v1020, %v1004
    %v1373 = vpack.c.b16 %v1021, %v1005
    %v1374 = vpack.c.b16 %v1022, %v1006
    %v1375 = vpack.c.b16 %v1023, %v1007
    %v1376 = vpack.c.b16 %v1024, %v1008
    %v1377 = vpack.c.b16 %v1025, %v1009
    %v1378 = vpack.c.b16 %v1026, %v1010
    %v1379 = vpack.c.b16 %v1027, %v1011
    %v1380 = vpack.c.b16 %v1028, %v1012
    %v1381 = vpack.c.b16 %v1045, %v1029
    %v1382 = vpack.c.b16 %v1046, %v1030
    %v1383 = vpack.c.b16 %v1047, %v1031
    %v1384 = vpack.c.b16 %v1048, %v1032
    %v1385 = vpack.c.b16 %v1049, %v1033
    %v1386 = vpack.c.b16 %v1050, %v1034
    %v1387 = vpack.c.b16 %v1051, %v1035
    %v1388 = vpack.c.b16 %v1052, %v1036
    %v1389 = vpack.c.b16 %v1053, %v1037
    %v1390 = vpack.c.b16 %v1054, %v1038
    %v1391 = vpack.c.b16 %v1055, %v1039
    %v1392 = vpack.c.b16 %v1056, %v1040
    %v1393 = vpack.c.b16 %v1057, %v1041
    %v1394 = vpack.c.b16 %v1058, %v1042
    %v1395 = vpack.c.b16 %v1059, %v1043
    %v1396 = vpack.c.b16 %v1060, %v1044
    %v1397 = vpack.c.b16 %v1077, %v1061
    %v1398 = vpack.c.b16 %v1078, %v1062
    %v1399 = vpack.c.b16 %v1079, %v1063
    %v1400 = vpack.c.b16 %v1080, %v1064
    %v1401 = vpack.c.b16 %v1081, %v1065
    %v1402 = vpack.c.b16 %v1082, %v1066
    %v1403 = vpack.c.b16 %v1083, %v1067
    %v1404 = vpack.c.b16 %v1084, %v1068
    %v1405 = vpack.c.b16 %v1085, %v1069
    %v1406 = vpack.c.b16 %v1086, %v1070
    %v1407 = vpack.c.b16 %v1087, %v1071
    %v1408 = vpack.c.b16 %v1088, %v1072
    %v1409 = vpack.c.b16 %v1089, %v1073
    %v1410 = vpack.c.b16 %v1090, %v1074
    %v1411 = vpack.c.b16 %v1091, %v1075
    %v1412 = vpack.c.b16 %v1092, %v1076
    %v1413 = vpack.c.b16 %v1109, %v1093
    %v1414 = vpack.c.b16 %v1110, %v1094
    %v1415 = vpack.c.b16 %v1111, %v1095
    %v1416 = vpack.c.b16 %v1112, %v1096
    %v1417 = vpack.c.b16 %v1113, %v1097
    %v1418 = vpack.c.b16 %v1114, %v1098
    %v1419 = vpack.c.b16 %v1115, %v1099
    %v1420 = vpack.c.b16 %v1116, %v1100
    %v1421 = vpack.c.b16 %v1117, %v1101
    %v1422 = vpack.c.b16 %v1118, %v1102
    %v1423 = vpack.c.b16 %v1119, %v1103
    %v1424 = vpack.c.b16 %v1120, %v1104
    %v1425 = vpack.c.b16 %v1121, %v1105
    %v1426 = vpack.c.b16 %v1122, %v1106
    %v1427 = vpack.c.b16 %v1123, %v1107
    %v1428 = vpack.c.b16 %v1124, %v1108
    %v1429 = vpack.c.b16 %v1141, %v1125
    %v1430 = vpack.c.b16 %v1142, %v1126
    %v1431 = vpack.c.b16 %v1143, %v1127
    %v1432 = vpack.c.b16 %v1144, %v1128
    %v1433 = vpack.c.b16 %v1145, %v1129
    %v1434 = vpack.c.b16 %v1146, %v1130
    %v1435 = vpack.c.b16 %v1147, %v1131
    %v1436 = vpack.c.b16 %v1148, %v1132
    %v1437 = vpack.c.b16 %v1149, %v1133
    %v1438 = vpack.c.b16 %v1150, %v1134
    %v1439 = vpack.c.b16 %v1151, %v1135
    %v1440 = vpack.c.b16 %v1152, %v1136
    %v1441 = vpack.c.b16 %v1153, %v1137
    %v1442 = vpack.c.b16 %v1154, %v1138
    %v1443 = vpack.c.b16 %v1155, %v1139
    %v1444 = vpack.c.b16 %v1156, %v1140
    %v1445 = vpack.c.b16 %v1173, %v1157
    %v1446 = vpack.c.b16 %v1174, %v1158
    %v1447 = vpack.c.b16 %v1175, %v1159
    %v1448 = vpack.c.b16 %v1176, %v1160
    %v1449 = vpack.c.b16 %v1177, %v1161
    %v1450 = vpack.c.b16 %v1178, %v1162
    %v1451 = vpack.c.b16 %v1179, %v1163
    %v1452 = vpack.c.b16 %v1180, %v1164
    %v1453 = vpack.c.b16 %v1181, %v1165
    %v1454 = vpack.c.b16 %v1182, %v1166
    %v1455 = vpack.c.b16 %v1183, %v1167
    %v1456 = vpack.c.b16 %v1184, %v1168
    %v1457 = vpack.c.b16 %v1185, %v1169
    %v1458 = vpack.c.b16 %v1186, %v1170
    %v1459 = vpack.c.b16 %v1187, %v1171
    %v1460 = vpack.c.b16 %v1188, %v1172
    %v1461 = vpack.c.b16 %v1205, %v1189
    %v1462 = vpack.c.b16 %v1206, %v1190
    %v1463 = vpack.c.b16 %v1207, %v1191
    %v1464 = vpack.c.b16 %v1208, %v1192
    %v1465 = vpack.c.b16 %v1209, %v1193
    %v1466 = vpack.c.b16 %v1210, %v1194
    %v1467 = vpack.c.b16 %v1211, %v1195
    %v1468 = vpack.c.b16 %v1212, %v1196
    %v1469 = vpack.c.b16 %v1213, %v1197
    %v1470 = vpack.c.b16 %v1214, %v1198
    %v1471 = vpack.c.b16 %v1215, %v1199
    %v1472 = vpack.c.b16 %v1216, %v1200
    %v1473 = vpack.c.b16 %v1217, %v1201
    %v1474 = vpack.c.b16 %v1218, %v1202
    %v1475 = vpack.c.b16 %v1219, %v1203
    %v1476 = vpack.c.b16 %v1220, %v1204
    %1733 = vmatpush.bf16.msra.mxu0 %v1333
    %1734 = vmatpush.bf16.msra.mxu0 %v1317
    %1735 = vmatpush.bf16.msra.mxu0 %v1301
    %1736 = vmatpush.bf16.msra.mxu0 %v1285
    %1737 = vmatpush.bf16.msra.mxu0 %v1269
    %1738 = vmatpush.bf16.msra.mxu0 %v1253
    %1739 = vmatpush.bf16.msra.mxu0 %v1237
    %1740 = vmatpush.bf16.msra.mxu0 %v1221
    %1741 = vmatmul.bf16.gmra.mxu0 %v159
    %v1742 = vpop.f32.mrf.mxu0
    %v1743 = vadd.f32 %v421, %v1742
    %v1744 = vpop.f32.mrf.mxu0
    %1745 = vdwg.mxu0
    %1746 = vmatpush.bf16.msra.mxu0 %v1461
    %1747 = vmatpush.bf16.msra.mxu0 %v1445
    %1748 = vmatpush.bf16.msra.mxu0 %v1429
    %1749 = vmatpush.bf16.msra.mxu0 %v1413
    %1750 = vmatpush.bf16.msra.mxu0 %v1397
    %1751 = vmatpush.bf16.msra.mxu0 %v1381
    %1752 = vmatpush.bf16.msra.mxu0 %v1365
    %1753 = vmatpush.bf16.msra.mxu0 %v1349
    %1754 = vmatmul.bf16.gmra.mxu0 %v160
    %v1755 = vpop.f32.mrf.mxu0
    %v1756 = vadd.f32 %v1743, %v1755
    %v1757 = vpop.f32.mrf.mxu0
    %1758 = vdwg.mxu0
    %1759 = vmatpush.bf16.msra.mxu0 %v1334
    %1760 = vmatpush.bf16.msra.mxu0 %v1318
    %1761 = vmatpush.bf16.msra.mxu0 %v1302
    %1762 = vmatpush.bf16.msra.mxu0 %v1286
    %1763 = vmatpush.bf16.msra.mxu0 %v1270
    %1764 = vmatpush.bf16.msra.mxu0 %v1254
    %1765 = vmatpush.bf16.msra.mxu0 %v1238
    %1766 = vmatpush.bf16.msra.mxu0 %v1222
    %1767 = vmatmul.bf16.gmra.mxu0 %v159
    %v1768 = vpop.f32.mrf.mxu0
    %v1769 = vadd.f32 %v422, %v1768
    %v1770 = vpop.f32.mrf.mxu0
    %1771 = vdwg.mxu0
    %1772 = vmatpush.bf16.msra.mxu0 %v1462
    %1773 = vmatpush.bf16.msra.mxu0 %v1446
    %1774 = vmatpush.bf16.msra.mxu0 %v1430
    %1775 = vmatpush.bf16.msra.mxu0 %v1414
    %1776 = vmatpush.bf16.msra.mxu0 %v1398
    %1777 = vmatpush.bf16.msra.mxu0 %v1382
    %1778 = vmatpush.bf16.msra.mxu0 %v1366
    %1779 = vmatpush.bf16.msra.mxu0 %v1350
    %1780 = vmatmul.bf16.gmra.mxu0 %v160
    %v1781 = vpop.f32.mrf.mxu0
    %v1782 = vadd.f32 %v1769, %v1781
    %v1783 = vpop.f32.mrf.mxu0
    %1784 = vdwg.mxu0
    %1785 = vmatpush.bf16.msra.mxu0 %v1335
    %1786 = vmatpush.bf16.msra.mxu0 %v1319
    %1787 = vmatpush.bf16.msra.mxu0 %v1303
    %1788 = vmatpush.bf16.msra.mxu0 %v1287
    %1789 = vmatpush.bf16.msra.mxu0 %v1271
    %1790 = vmatpush.bf16.msra.mxu0 %v1255
    %1791 = vmatpush.bf16.msra.mxu0 %v1239
    %1792 = vmatpush.bf16.msra.mxu0 %v1223
    %1793 = vmatmul.bf16.gmra.mxu0 %v159
    %v1794 = vpop.f32.mrf.mxu0
    %v1795 = vadd.f32 %v423, %v1794
    %v1796 = vpop.f32.mrf.mxu0
    %1797 = vdwg.mxu0
    %1798 = vmatpush.bf16.msra.mxu0 %v1463
    %1799 = vmatpush.bf16.msra.mxu0 %v1447
    %1800 = vmatpush.bf16.msra.mxu0 %v1431
    %1801 = vmatpush.bf16.msra.mxu0 %v1415
    %1802 = vmatpush.bf16.msra.mxu0 %v1399
    %1803 = vmatpush.bf16.msra.mxu0 %v1383
    %1804 = vmatpush.bf16.msra.mxu0 %v1367
    %1805 = vmatpush.bf16.msra.mxu0 %v1351
    %1806 = vmatmul.bf16.gmra.mxu0 %v160
    %v1807 = vpop.f32.mrf.mxu0
    %v1808 = vadd.f32 %v1795, %v1807
    %v1809 = vpop.f32.mrf.mxu0
    %1810 = vdwg.mxu0
    %1811 = vmatpush.bf16.msra.mxu0 %v1336
    %1812 = vmatpush.bf16.msra.mxu0 %v1320
    %1813 = vmatpush.bf16.msra.mxu0 %v1304
    %1814 = vmatpush.bf16.msra.mxu0 %v1288
    %1815 = vmatpush.bf16.msra.mxu0 %v1272
    %1816 = vmatpush.bf16.msra.mxu0 %v1256
    %1817 = vmatpush.bf16.msra.mxu0 %v1240
    %1818 = vmatpush.bf16.msra.mxu0 %v1224
    %1819 = vmatmul.bf16.gmra.mxu0 %v159
    %v1820 = vpop.f32.mrf.mxu0
    %v1821 = vadd.f32 %v424, %v1820
    %v1822 = vpop.f32.mrf.mxu0
    %1823 = vdwg.mxu0
    %1824 = vmatpush.bf16.msra.mxu0 %v1464
    %1825 = vmatpush.bf16.msra.mxu0 %v1448
    %1826 = vmatpush.bf16.msra.mxu0 %v1432
    %1827 = vmatpush.bf16.msra.mxu0 %v1416
    %1828 = vmatpush.bf16.msra.mxu0 %v1400
    %1829 = vmatpush.bf16.msra.mxu0 %v1384
    %1830 = vmatpush.bf16.msra.mxu0 %v1368
    %1831 = vmatpush.bf16.msra.mxu0 %v1352
    %1832 = vmatmul.bf16.gmra.mxu0 %v160
    %v1833 = vpop.f32.mrf.mxu0
    %v1834 = vadd.f32 %v1821, %v1833
    %v1835 = vpop.f32.mrf.mxu0
    %1836 = vdwg.mxu0
    %1837 = vmatpush.bf16.msra.mxu0 %v1337
    %1838 = vmatpush.bf16.msra.mxu0 %v1321
    %1839 = vmatpush.bf16.msra.mxu0 %v1305
    %1840 = vmatpush.bf16.msra.mxu0 %v1289
    %1841 = vmatpush.bf16.msra.mxu0 %v1273
    %1842 = vmatpush.bf16.msra.mxu0 %v1257
    %1843 = vmatpush.bf16.msra.mxu0 %v1241
    %1844 = vmatpush.bf16.msra.mxu0 %v1225
    %1845 = vmatmul.bf16.gmra.mxu0 %v159
    %v1846 = vpop.f32.mrf.mxu0
    %v1847 = vadd.f32 %v425, %v1846
    %v1848 = vpop.f32.mrf.mxu0
    %1849 = vdwg.mxu0
    %1850 = vmatpush.bf16.msra.mxu0 %v1465
    %1851 = vmatpush.bf16.msra.mxu0 %v1449
    %1852 = vmatpush.bf16.msra.mxu0 %v1433
    %1853 = vmatpush.bf16.msra.mxu0 %v1417
    %1854 = vmatpush.bf16.msra.mxu0 %v1401
    %1855 = vmatpush.bf16.msra.mxu0 %v1385
    %1856 = vmatpush.bf16.msra.mxu0 %v1369
    %1857 = vmatpush.bf16.msra.mxu0 %v1353
    %1858 = vmatmul.bf16.gmra.mxu0 %v160
    %v1859 = vpop.f32.mrf.mxu0
    %v1860 = vadd.f32 %v1847, %v1859
    %v1861 = vpop.f32.mrf.mxu0
    %1862 = vdwg.mxu0
    %1863 = vmatpush.bf16.msra.mxu0 %v1338
    %1864 = vmatpush.bf16.msra.mxu0 %v1322
    %1865 = vmatpush.bf16.msra.mxu0 %v1306
    %1866 = vmatpush.bf16.msra.mxu0 %v1290
    %1867 = vmatpush.bf16.msra.mxu0 %v1274
    %1868 = vmatpush.bf16.msra.mxu0 %v1258
    %1869 = vmatpush.bf16.msra.mxu0 %v1242
    %1870 = vmatpush.bf16.msra.mxu0 %v1226
    %1871 = vmatmul.bf16.gmra.mxu0 %v159
    %v1872 = vpop.f32.mrf.mxu0
    %v1873 = vadd.f32 %v426, %v1872
    %v1874 = vpop.f32.mrf.mxu0
    %1875 = vdwg.mxu0
    %1876 = vmatpush.bf16.msra.mxu0 %v1466
    %1877 = vmatpush.bf16.msra.mxu0 %v1450
    %1878 = vmatpush.bf16.msra.mxu0 %v1434
    %1879 = vmatpush.bf16.msra.mxu0 %v1418
    %1880 = vmatpush.bf16.msra.mxu0 %v1402
    %1881 = vmatpush.bf16.msra.mxu0 %v1386
    %1882 = vmatpush.bf16.msra.mxu0 %v1370
    %1883 = vmatpush.bf16.msra.mxu0 %v1354
    %1884 = vmatmul.bf16.gmra.mxu0 %v160
    %v1885 = vpop.f32.mrf.mxu0
    %v1886 = vadd.f32 %v1873, %v1885
    %v1887 = vpop.f32.mrf.mxu0
    %1888 = vdwg.mxu0
    %1889 = vmatpush.bf16.msra.mxu0 %v1339
    %1890 = vmatpush.bf16.msra.mxu0 %v1323
    %1891 = vmatpush.bf16.msra.mxu0 %v1307
    %1892 = vmatpush.bf16.msra.mxu0 %v1291
    %1893 = vmatpush.bf16.msra.mxu0 %v1275
    %1894 = vmatpush.bf16.msra.mxu0 %v1259
    %1895 = vmatpush.bf16.msra.mxu0 %v1243
    %1896 = vmatpush.bf16.msra.mxu0 %v1227
    %1897 = vmatmul.bf16.gmra.mxu0 %v159
    %v1898 = vpop.f32.mrf.mxu0
    %v1899 = vadd.f32 %v427, %v1898
    %v1900 = vpop.f32.mrf.mxu0
    %1901 = vdwg.mxu0
    %1902 = vmatpush.bf16.msra.mxu0 %v1467
    %1903 = vmatpush.bf16.msra.mxu0 %v1451
    %1904 = vmatpush.bf16.msra.mxu0 %v1435
    %1905 = vmatpush.bf16.msra.mxu0 %v1419
    %1906 = vmatpush.bf16.msra.mxu0 %v1403
    %1907 = vmatpush.bf16.msra.mxu0 %v1387
    %1908 = vmatpush.bf16.msra.mxu0 %v1371
    %1909 = vmatpush.bf16.msra.mxu0 %v1355
    %1910 = vmatmul.bf16.gmra.mxu0 %v160
    %v1911 = vpop.f32.mrf.mxu0
    %v1912 = vadd.f32 %v1899, %v1911
    %v1913 = vpop.f32.mrf.mxu0
    %1914 = vdwg.mxu0
    %1915 = vmatpush.bf16.msra.mxu0 %v1340
    %1916 = vmatpush.bf16.msra.mxu0 %v1324
    %1917 = vmatpush.bf16.msra.mxu0 %v1308
    %1918 = vmatpush.bf16.msra.mxu0 %v1292
    %1919 = vmatpush.bf16.msra.mxu0 %v1276
    %1920 = vmatpush.bf16.msra.mxu0 %v1260
    %1921 = vmatpush.bf16.msra.mxu0 %v1244
    %1922 = vmatpush.bf16.msra.mxu0 %v1228
    %1923 = vmatmul.bf16.gmra.mxu0 %v159
    %v1924 = vpop.f32.mrf.mxu0
    %v1925 = vadd.f32 %v428, %v1924
    %v1926 = vpop.f32.mrf.mxu0
    %1927 = vdwg.mxu0
    %1928 = vmatpush.bf16.msra.mxu0 %v1468
    %1929 = vmatpush.bf16.msra.mxu0 %v1452
    %1930 = vmatpush.bf16.msra.mxu0 %v1436
    %1931 = vmatpush.bf16.msra.mxu0 %v1420
    %1932 = vmatpush.bf16.msra.mxu0 %v1404
    %1933 = vmatpush.bf16.msra.mxu0 %v1388
    %1934 = vmatpush.bf16.msra.mxu0 %v1372
    %1935 = vmatpush.bf16.msra.mxu0 %v1356
    %1936 = vmatmul.bf16.gmra.mxu0 %v160
    %v1937 = vpop.f32.mrf.mxu0
    %v1938 = vadd.f32 %v1925, %v1937
    %v1939 = vpop.f32.mrf.mxu0
    %1940 = vdwg.mxu0
    %1941 = vmatpush.bf16.msra.mxu0 %v1341
    %1942 = vmatpush.bf16.msra.mxu0 %v1325
    %1943 = vmatpush.bf16.msra.mxu0 %v1309
    %1944 = vmatpush.bf16.msra.mxu0 %v1293
    %1945 = vmatpush.bf16.msra.mxu0 %v1277
    %1946 = vmatpush.bf16.msra.mxu0 %v1261
    %1947 = vmatpush.bf16.msra.mxu0 %v1245
    %1948 = vmatpush.bf16.msra.mxu0 %v1229
    %1949 = vmatmul.bf16.gmra.mxu0 %v159
    %v1950 = vpop.f32.mrf.mxu0
    %v1951 = vadd.f32 %v429, %v1950
    %v1952 = vpop.f32.mrf.mxu0
    %1953 = vdwg.mxu0
    %1954 = vmatpush.bf16.msra.mxu0 %v1469
    %1955 = vmatpush.bf16.msra.mxu0 %v1453
    %1956 = vmatpush.bf16.msra.mxu0 %v1437
    %1957 = vmatpush.bf16.msra.mxu0 %v1421
    %1958 = vmatpush.bf16.msra.mxu0 %v1405
    %1959 = vmatpush.bf16.msra.mxu0 %v1389
    %1960 = vmatpush.bf16.msra.mxu0 %v1373
    %1961 = vmatpush.bf16.msra.mxu0 %v1357
    %1962 = vmatmul.bf16.gmra.mxu0 %v160
    %v1963 = vpop.f32.mrf.mxu0
    %v1964 = vadd.f32 %v1951, %v1963
    %v1965 = vpop.f32.mrf.mxu0
    %1966 = vdwg.mxu0
    %1967 = vmatpush.bf16.msra.mxu0 %v1342
    %1968 = vmatpush.bf16.msra.mxu0 %v1326
    %1969 = vmatpush.bf16.msra.mxu0 %v1310
    %1970 = vmatpush.bf16.msra.mxu0 %v1294
    %1971 = vmatpush.bf16.msra.mxu0 %v1278
    %1972 = vmatpush.bf16.msra.mxu0 %v1262
    %1973 = vmatpush.bf16.msra.mxu0 %v1246
    %1974 = vmatpush.bf16.msra.mxu0 %v1230
    %1975 = vmatmul.bf16.gmra.mxu0 %v159
    %v1976 = vpop.f32.mrf.mxu0
    %v1977 = vadd.f32 %v430, %v1976
    %v1978 = vpop.f32.mrf.mxu0
    %1979 = vdwg.mxu0
    %1980 = vmatpush.bf16.msra.mxu0 %v1470
    %1981 = vmatpush.bf16.msra.mxu0 %v1454
    %1982 = vmatpush.bf16.msra.mxu0 %v1438
    %1983 = vmatpush.bf16.msra.mxu0 %v1422
    %1984 = vmatpush.bf16.msra.mxu0 %v1406
    %1985 = vmatpush.bf16.msra.mxu0 %v1390
    %1986 = vmatpush.bf16.msra.mxu0 %v1374
    %1987 = vmatpush.bf16.msra.mxu0 %v1358
    %1988 = vmatmul.bf16.gmra.mxu0 %v160
    %v1989 = vpop.f32.mrf.mxu0
    %v1990 = vadd.f32 %v1977, %v1989
    %v1991 = vpop.f32.mrf.mxu0
    %1992 = vdwg.mxu0
    %1993 = vmatpush.bf16.msra.mxu0 %v1343
    %1994 = vmatpush.bf16.msra.mxu0 %v1327
    %1995 = vmatpush.bf16.msra.mxu0 %v1311
    %1996 = vmatpush.bf16.msra.mxu0 %v1295
    %1997 = vmatpush.bf16.msra.mxu0 %v1279
    %1998 = vmatpush.bf16.msra.mxu0 %v1263
    %1999 = vmatpush.bf16.msra.mxu0 %v1247
    %2000 = vmatpush.bf16.msra.mxu0 %v1231
    %2001 = vmatmul.bf16.gmra.mxu0 %v159
    %v2002 = vpop.f32.mrf.mxu0
    %v2003 = vadd.f32 %v431, %v2002
    %v2004 = vpop.f32.mrf.mxu0
    %2005 = vdwg.mxu0
    %2006 = vmatpush.bf16.msra.mxu0 %v1471
    %2007 = vmatpush.bf16.msra.mxu0 %v1455
    %2008 = vmatpush.bf16.msra.mxu0 %v1439
    %2009 = vmatpush.bf16.msra.mxu0 %v1423
    %2010 = vmatpush.bf16.msra.mxu0 %v1407
    %2011 = vmatpush.bf16.msra.mxu0 %v1391
    %2012 = vmatpush.bf16.msra.mxu0 %v1375
    %2013 = vmatpush.bf16.msra.mxu0 %v1359
    %2014 = vmatmul.bf16.gmra.mxu0 %v160
    %v2015 = vpop.f32.mrf.mxu0
    %v2016 = vadd.f32 %v2003, %v2015
    %v2017 = vpop.f32.mrf.mxu0
    %2018 = vdwg.mxu0
    %2019 = vmatpush.bf16.msra.mxu0 %v1344
    %2020 = vmatpush.bf16.msra.mxu0 %v1328
    %2021 = vmatpush.bf16.msra.mxu0 %v1312
    %2022 = vmatpush.bf16.msra.mxu0 %v1296
    %2023 = vmatpush.bf16.msra.mxu0 %v1280
    %2024 = vmatpush.bf16.msra.mxu0 %v1264
    %2025 = vmatpush.bf16.msra.mxu0 %v1248
    %2026 = vmatpush.bf16.msra.mxu0 %v1232
    %2027 = vmatmul.bf16.gmra.mxu0 %v159
    %v2028 = vpop.f32.mrf.mxu0
    %v2029 = vadd.f32 %v432, %v2028
    %v2030 = vpop.f32.mrf.mxu0
    %2031 = vdwg.mxu0
    %2032 = vmatpush.bf16.msra.mxu0 %v1472
    %2033 = vmatpush.bf16.msra.mxu0 %v1456
    %2034 = vmatpush.bf16.msra.mxu0 %v1440
    %2035 = vmatpush.bf16.msra.mxu0 %v1424
    %2036 = vmatpush.bf16.msra.mxu0 %v1408
    %2037 = vmatpush.bf16.msra.mxu0 %v1392
    %2038 = vmatpush.bf16.msra.mxu0 %v1376
    %2039 = vmatpush.bf16.msra.mxu0 %v1360
    %2040 = vmatmul.bf16.gmra.mxu0 %v160
    %v2041 = vpop.f32.mrf.mxu0
    %v2042 = vadd.f32 %v2029, %v2041
    %v2043 = vpop.f32.mrf.mxu0
    %2044 = vdwg.mxu0
    %2045 = vmatpush.bf16.msra.mxu0 %v1345
    %2046 = vmatpush.bf16.msra.mxu0 %v1329
    %2047 = vmatpush.bf16.msra.mxu0 %v1313
    %2048 = vmatpush.bf16.msra.mxu0 %v1297
    %2049 = vmatpush.bf16.msra.mxu0 %v1281
    %2050 = vmatpush.bf16.msra.mxu0 %v1265
    %2051 = vmatpush.bf16.msra.mxu0 %v1249
    %2052 = vmatpush.bf16.msra.mxu0 %v1233
    %2053 = vmatmul.bf16.gmra.mxu0 %v159
    %v2054 = vpop.f32.mrf.mxu0
    %v2055 = vadd.f32 %v433, %v2054
    %v2056 = vpop.f32.mrf.mxu0
    %2057 = vdwg.mxu0
    %2058 = vmatpush.bf16.msra.mxu0 %v1473
    %2059 = vmatpush.bf16.msra.mxu0 %v1457
    %2060 = vmatpush.bf16.msra.mxu0 %v1441
    %2061 = vmatpush.bf16.msra.mxu0 %v1425
    %2062 = vmatpush.bf16.msra.mxu0 %v1409
    %2063 = vmatpush.bf16.msra.mxu0 %v1393
    %2064 = vmatpush.bf16.msra.mxu0 %v1377
    %2065 = vmatpush.bf16.msra.mxu0 %v1361
    %2066 = vmatmul.bf16.gmra.mxu0 %v160
    %v2067 = vpop.f32.mrf.mxu0
    %v2068 = vadd.f32 %v2055, %v2067
    %v2069 = vpop.f32.mrf.mxu0
    %2070 = vdwg.mxu0
    %2071 = vmatpush.bf16.msra.mxu0 %v1346
    %2072 = vmatpush.bf16.msra.mxu0 %v1330
    %2073 = vmatpush.bf16.msra.mxu0 %v1314
    %2074 = vmatpush.bf16.msra.mxu0 %v1298
    %2075 = vmatpush.bf16.msra.mxu0 %v1282
    %2076 = vmatpush.bf16.msra.mxu0 %v1266
    %2077 = vmatpush.bf16.msra.mxu0 %v1250
    %2078 = vmatpush.bf16.msra.mxu0 %v1234
    %2079 = vmatmul.bf16.gmra.mxu0 %v159
    %v2080 = vpop.f32.mrf.mxu0
    %v2081 = vadd.f32 %v434, %v2080
    %v2082 = vpop.f32.mrf.mxu0
    %2083 = vdwg.mxu0
    %2084 = vmatpush.bf16.msra.mxu0 %v1474
    %2085 = vmatpush.bf16.msra.mxu0 %v1458
    %2086 = vmatpush.bf16.msra.mxu0 %v1442
    %2087 = vmatpush.bf16.msra.mxu0 %v1426
    %2088 = vmatpush.bf16.msra.mxu0 %v1410
    %2089 = vmatpush.bf16.msra.mxu0 %v1394
    %2090 = vmatpush.bf16.msra.mxu0 %v1378
    %2091 = vmatpush.bf16.msra.mxu0 %v1362
    %2092 = vmatmul.bf16.gmra.mxu0 %v160
    %v2093 = vpop.f32.mrf.mxu0
    %v2094 = vadd.f32 %v2081, %v2093
    %v2095 = vpop.f32.mrf.mxu0
    %2096 = vdwg.mxu0
    %2097 = vmatpush.bf16.msra.mxu0 %v1347
    %2098 = vmatpush.bf16.msra.mxu0 %v1331
    %2099 = vmatpush.bf16.msra.mxu0 %v1315
    %2100 = vmatpush.bf16.msra.mxu0 %v1299
    %2101 = vmatpush.bf16.msra.mxu0 %v1283
    %2102 = vmatpush.bf16.msra.mxu0 %v1267
    %2103 = vmatpush.bf16.msra.mxu0 %v1251
    %2104 = vmatpush.bf16.msra.mxu0 %v1235
    %2105 = vmatmul.bf16.gmra.mxu0 %v159
    %v2106 = vpop.f32.mrf.mxu0
    %v2107 = vadd.f32 %v435, %v2106
    %v2108 = vpop.f32.mrf.mxu0
    %2109 = vdwg.mxu0
    %2110 = vmatpush.bf16.msra.mxu0 %v1475
    %2111 = vmatpush.bf16.msra.mxu0 %v1459
    %2112 = vmatpush.bf16.msra.mxu0 %v1443
    %2113 = vmatpush.bf16.msra.mxu0 %v1427
    %2114 = vmatpush.bf16.msra.mxu0 %v1411
    %2115 = vmatpush.bf16.msra.mxu0 %v1395
    %2116 = vmatpush.bf16.msra.mxu0 %v1379
    %2117 = vmatpush.bf16.msra.mxu0 %v1363
    %2118 = vmatmul.bf16.gmra.mxu0 %v160
    %v2119 = vpop.f32.mrf.mxu0
    %v2120 = vadd.f32 %v2107, %v2119
    %v2121 = vpop.f32.mrf.mxu0
    %2122 = vdwg.mxu0
    %2123 = vmatpush.bf16.msra.mxu0 %v1348
    %2124 = vmatpush.bf16.msra.mxu0 %v1332
    %2125 = vmatpush.bf16.msra.mxu0 %v1316
    %2126 = vmatpush.bf16.msra.mxu0 %v1300
    %2127 = vmatpush.bf16.msra.mxu0 %v1284
    %2128 = vmatpush.bf16.msra.mxu0 %v1268
    %2129 = vmatpush.bf16.msra.mxu0 %v1252
    %2130 = vmatpush.bf16.msra.mxu0 %v1236
    %2131 = vmatmul.bf16.gmra.mxu0 %v159
    %v2132 = vpop.f32.mrf.mxu0
    %v2133 = vadd.f32 %v436, %v2132
    %v2134 = vpop.f32.mrf.mxu0
    %2135 = vdwg.mxu0
    %2136 = vmatpush.bf16.msra.mxu0 %v1476
    %2137 = vmatpush.bf16.msra.mxu0 %v1460
    %2138 = vmatpush.bf16.msra.mxu0 %v1444
    %2139 = vmatpush.bf16.msra.mxu0 %v1428
    %2140 = vmatpush.bf16.msra.mxu0 %v1412
    %2141 = vmatpush.bf16.msra.mxu0 %v1396
    %2142 = vmatpush.bf16.msra.mxu0 %v1380
    %2143 = vmatpush.bf16.msra.mxu0 %v1364
    %2144 = vmatmul.bf16.gmra.mxu0 %v160
    %v2145 = vpop.f32.mrf.mxu0
    %v2146 = vadd.f32 %v2133, %v2145
    %v2147 = vpop.f32.mrf.mxu0
    %2148 = vdwg.mxu0
    %v2149 = vmax.f32 %v1756, 0.0
    %v2150 = vmax.f32 %v1782, 0.0
    %v2151 = vmax.f32 %v1808, 0.0
    %v2152 = vmax.f32 %v1834, 0.0
    %v2153 = vmax.f32 %v1860, 0.0
    %v2154 = vmax.f32 %v1886, 0.0
    %v2155 = vmax.f32 %v1912, 0.0
    %v2156 = vmax.f32 %v1938, 0.0
    %v2157 = vmax.f32 %v1964, 0.0
    %v2158 = vmax.f32 %v1990, 0.0
    %v2159 = vmax.f32 %v2016, 0.0
    %v2160 = vmax.f32 %v2042, 0.0
    %v2161 = vmax.f32 %v2068, 0.0
    %v2162 = vmax.f32 %v2094, 0.0
    %v2163 = vmax.f32 %v2120, 0.0
    %v2164 = vmax.f32 %v2146, 0.0
    %v2165 = vpack.c.bf16 %v2150, %v2149
    %v2166 = vpack.c.bf16 %v2152, %v2151
    %v2167 = vpack.c.bf16 %v2154, %v2153
    %v2168 = vpack.c.bf16 %v2156, %v2155
    %v2169 = vpack.c.bf16 %v2158, %v2157
    %v2170 = vpack.c.bf16 %v2160, %v2159
    %v2171 = vpack.c.bf16 %v2162, %v2161
    %v2172 = vpack.c.bf16 %v2164, %v2163
    %2173 = vst [vmem:[#allocation11] sm:$0xff] %v2165
    %2174 = vst [vmem:[#allocation11 + $0x8] sm:$0xff] %v2166
    %2175 = vst [vmem:[#allocation11 + $0x10] sm:$0xff] %v2167
    %2176 = vst [vmem:[#allocation11 + $0x18] sm:$0xff] %v2168
    %2177 = vst [vmem:[#allocation11 + $0x20] sm:$0xff] %v2169
    %2178 = vst [vmem:[#allocation11 + $0x28] sm:$0xff] %v2170
    %2179 = vst [vmem:[#allocation11 + $0x30] sm:$0xff] %v2171
    %2180 = vst [vmem:[#allocation11 + $0x38] sm:$0xff] %v2172
    // Predicated region
    $region42: #{tpu_custom_call.1} parent=1 // pred_check
      _
    $region43: #{tpu_custom_call.1} parent=1 // pred_check_branch
      %2182 = sbr.rel (0) target = $region45
    $region44: #{tpu_custom_call.1} parent=1 // pred_region
      %2184 = vsyncadd [#allocation4], 0
      %s2186 = sshll.u32 [#allocation11], 4
      %s2187 = int_to_ptr.vmem [resolvable:$true] %s2186
      %s2188 = sshll.u32 %s5, 4
      %s2189 = int_to_ptr.hbm [resolvable:$true] %s2188
      %2191 = dma.vmem_to_hbm [thread:$0]  %s2187, 1024, %s2189, [#allocation4]
    $region45: #{tpu_custom_call.1} parent=1 // pred_fallthru
      _
    // Predicated region
    $region46: #{tpu_custom_call.1} parent=1 // pred_check
      _
    $region47: #{tpu_custom_call.1} parent=1 // pred_check_branch
      %2193 = sbr.rel (0) target = $region49
    $region48: #{tpu_custom_call.1} parent=1 // pred_region
      %2195 = dma.done [#allocation4], 1024
    $region49: #{tpu_custom_call.1} parent=1 // pred_fallthru
      _
    %2196 = vsyncpa [#allocation3], 1
    %2197 = vsyncpa [#allocation6], 1
    %2198 = vsyncpa [#allocation9], 1
    %2199 = vsyncpa [#allocation4], 1

</llo_original>
